<compile_context>
chip_gen: v5e
topology: v5e:2x2
jax: 0.10.0
libtpu: 0.0.40
codegen_flags: <defaults>
</compile_context>

<pallas_src>
import functools

import jax
import jax.numpy as jnp
import numpy as np
from jax import lax
from jax.experimental import pallas as pl
from jax.experimental.pallas import tpu as pltpu


def _round_up(n, m):
    return ((n + m - 1) // m) * m


def _nbytes(shape, dtype):
    return int(np.prod(shape)) * jnp.dtype(dtype).itemsize


# --------------------------------------------------------------------------
# Pallas kernel: GRU time recurrence for one layer.
#   grid = (nb batch tiles ["parallel"], T//tc time chunks ["arbitrary"])
#   gates_ref : (tc, bb, 3*Hp)  precomputed  x @ [Wxr|Wxz|Wxs] + [br|bz|bs]
#   h0_ref    : (bb, Hp)        initial hidden state (f32)
#   wh_rz_hbm : (Hp, 2*Hp)      fused [Whr|Whz]  (HBM, copied once per batch tile)
#   whs_hbm   : (Hp, Hp)        Whs              (HBM, copied once per batch tile)
#   outs_ref  : (tc, bb, Hp)    per-step hidden states
# --------------------------------------------------------------------------
def _gru_recurrence_kernel(gates_ref, h0_ref, wh_rz_hbm, whs_hbm,   # inputs
                           outs_ref,                                # outputs
                           h_scr, wh_rz_scr, whs_scr, dma_sem,      # scratch
                           *, hp, tc, unroll):
    # CORRECTNESS GUARDS:
    #  * the time axis (grid axis 1) must stay "arbitrary" (serial): the h
    #    carry lives in h_scr scratch across time chunks.
    #  * padded batch rows evolve to bias-only junk; this is harmless only
    #    because every op here is row-independent (no cross-row reductions).
    @pl.when(pl.program_id(1) == 0)
    def _():
        # Overlap the two one-time weight DMAs with the h0 -> h_scr init.
        cp_rz = pltpu.make_async_copy(wh_rz_hbm, wh_rz_scr, dma_sem.at[0])
        cp_s = pltpu.make_async_copy(whs_hbm, whs_scr, dma_sem.at[1])
        cp_rz.start()
        cp_s.start()
        h_scr[...] = h0_ref[...]
        cp_rz.wait()
        cp_s.wait()

    cdt = wh_rz_scr.dtype  # MXU compute dtype (bf16 or f32)

    def step(t, h):
        # Precomputed x-projection (+ bias) for this timestep.
        g = gates_ref[t].astype(jnp.float32)                       # (bb, 3Hp)
        # Fused r/z hidden matmul (one MXU push, N = 2*Hp).
        rz = jnp.dot(h.astype(cdt), wh_rz_scr[...],
                     preferred_element_type=jnp.float32)           # (bb, 2Hp)
        r = jax.nn.sigmoid(g[:, :hp] + rz[:, :hp])
        z = jax.nn.sigmoid(g[:, hp:2 * hp] + rz[:, hp:])
        s = jnp.tanh(g[:, 2 * hp:]
                     + jnp.dot((r * h).astype(cdt), whs_scr[...],
                               preferred_element_type=jnp.float32))
        h_new = s + z * (h - s)          # == z*h + (1-z)*s, one VPU op fewer
        outs_ref[t] = h_new.astype(outs_ref.dtype)
        return h_new

    h = lax.fori_loop(0, tc, step, h_scr[...], unroll=unroll)
    h_scr[...] = h      # carry hidden state to the next time chunk


def _gru_recurrence(gates, h0, wh_rz, whs, *, tc, hp, nb, out_dtype):
    """Run the recurrence over the whole sequence. gates: (T, Bp, 3*Hp)."""
    T, Bp, _ = gates.shape
    bb = Bp // nb

    # Partial unroll: largest divisor of tc that is <= 8 (bounds live-range /
    # vreg pressure while keeping LLO-scheduler visibility).
    unroll = 1
    for u in range(min(8, tc), 0, -1):
        if tc % u == 0:
            unroll = u
            break

    # Measured VMEM budget (instead of hardcoding the whole physical VMEM).
    wbytes = jnp.dtype(wh_rz.dtype).itemsize
    gbytes = jnp.dtype(gates.dtype).itemsize
    obytes = jnp.dtype(out_dtype).itemsize
    need = (3 * hp * hp * wbytes                # resident recurrent weights
            + 2 * tc * bb * 3 * hp * gbytes     # double-buffered gates block
            + 2 * tc * bb * hp * obytes         # double-buffered outs block
            + 2 * bb * hp * 4                   # double-buffered h0 block
            + bb * hp * 4)                      # hidden-state carry
    try:
        phys_vmem = int(pltpu.get_tpu_info().vmem_capacity_bytes)
    except Exception:
        phys_vmem = 128 * 1024 * 1024
    vmem_budget = min(max(2 * need + (8 << 20), 16 << 20), phys_vmem * 3 // 4)

    # Advisory cost hint for XLA scheduling around this long serial call.
    flops = 2 * T * Bp * hp * 3 * hp            # rz (N=2Hp) + state (N=Hp) matmuls
    transcendentals = 3 * T * Bp * hp           # 2x sigmoid + tanh per step
    bytes_accessed = (_nbytes(gates.shape, gates.dtype)
                      + _nbytes((T, Bp, hp), out_dtype)
                      + _nbytes(wh_rz.shape, wh_rz.dtype)
                      + _nbytes(whs.shape, whs.dtype)
                      + _nbytes(h0.shape, h0.dtype))

    kernel = functools.partial(_gru_recurrence_kernel, hp=hp, tc=tc,
                               unroll=unroll)
    outs = pl.pallas_call(
        kernel,
        out_shape=jax.ShapeDtypeStruct((T, Bp, hp), out_dtype),
        grid_spec=pltpu.PrefetchScalarGridSpec(
            num_scalar_prefetch=0,
            grid=(nb, T // tc),
            in_specs=[
                pl.BlockSpec((tc, bb, 3 * hp), lambda b, c: (c, b, 0)),  # gates
                pl.BlockSpec((bb, hp), lambda b, c: (b, 0)),             # h0
                pl.BlockSpec(memory_space=pl.ANY),                       # wh_rz (HBM)
                pl.BlockSpec(memory_space=pl.ANY),                       # whs   (HBM)
            ],
            out_specs=pl.BlockSpec((tc, bb, hp), lambda b, c: (c, b, 0)),
            scratch_shapes=[
                pltpu.VMEM((bb, hp), jnp.float32),        # hidden-state carry
                pltpu.VMEM(wh_rz.shape, wh_rz.dtype),     # resident fused [Whr|Whz]
                pltpu.VMEM(whs.shape, whs.dtype),         # resident Whs
                pltpu.SemaphoreType.DMA((2,)),            # weight-load sems
            ],
        ),
        compiler_params=pltpu.CompilerParams(
            # batch tiles independent ("parallel" -> megacore on v7x);
            # time MUST stay "arbitrary" (serial) for the h_scr carry.
            dimension_semantics=("parallel", "arbitrary"),
            vmem_limit_bytes=int(vmem_budget),
        ),
        cost_estimate=pl.CostEstimate(flops=int(flops),
                                      transcendentals=int(transcendentals),
                                      bytes_accessed=int(bytes_accessed)),
    )(gates, h0, wh_rz, whs)
    return outs


# --------------------------------------------------------------------------
# Parameter construction (torch nn.Linear layout: W (H, d_in+H), b (H,)).
# --------------------------------------------------------------------------
def init_monogru_params(key, n_input, n_hidden, n_layers):
    params = []
    for i in range(n_layers):
        d_in = n_input if i == 0 else n_hidden
        in_feat = d_in + n_hidden
        k = 1.0 / np.sqrt(in_feat)
        layer = {}
        for name in ("reset", "update", "state"):
            key, kw, kb = jax.random.split(key, 3)
            W = jax.random.uniform(kw, (n_hidden, in_feat), jnp.float32, -k, k)
            b = jax.random.uniform(kb, (n_hidden,), jnp.float32, -k, k)
            layer[name] = (W, b)
        params.append(layer)
    return params


# --------------------------------------------------------------------------
# Full MonoGRU forward.
#   inps : (T, B, n_input) f32,  hidd : (n_layers, B, n_hidden) f32 or None.
# --------------------------------------------------------------------------
def monogru_forward(params, inps, hidd=None, *,
                    compute_dtype=jnp.bfloat16, time_chunk=32):
    T, B, n_input = inps.shape
    n_layers = len(params)
    H = params[0]["state"][0].shape[0]
    if hidd is None:
        hidd = jnp.zeros((n_layers, B, H), jnp.float32)

    # Pad to hardware tiles: batch -> sublane, hidden -> lane (128).
    # When the batch is big enough, split it over a leading "parallel" grid
    # axis so v7x's two TensorCores each take half; bb stays a multiple of 16
    # so bf16 blocks keep native sublane tiling.
    if B <= 8:
        Bp, nb = 8, 1
    else:
        Bp, nb = _round_up(B, 32), 2
    Hp = _round_up(H, 128)

    # Largest time chunk <= time_chunk that divides T (amortizes the fixed
    # per-grid-step overhead; gates/outs blocks stay small relative to VMEM).
    tc = max(1, min(time_chunk, T))
    while T % tc:
        tc -= 1

    x = jnp.pad(inps.astype(jnp.float32), ((0, 0), (0, Bp - B), (0, 0)))
    hidd_p = jnp.pad(hidd.astype(jnp.float32),
                     ((0, 0), (0, Bp - B), (0, Hp - H)))

    hidds = []
    for i, layer in enumerate(params):
        d_in = n_input if i == 0 else H
        d_in_p = x.shape[-1]          # n_input for layer 0, Hp afterwards

        def split_pad(W):
            # torch layout (H, d_in+H): x-part -> (d_in_p, Hp), h-part -> (Hp, Hp)
            wx = jnp.pad(W[:, :d_in].T, ((0, d_in_p - d_in), (0, Hp - H)))
            wh = jnp.pad(W[:, d_in:].T, ((0, Hp - H), (0, Hp - H)))
            return wx, wh

        wxr, whr = split_pad(layer["reset"][0])
        wxz, whz = split_pad(layer["update"][0])
        wxs, whs = split_pad(layer["state"][0])
        br = jnp.pad(layer["reset"][1], (0, Hp - H))
        bz = jnp.pad(layer["update"][1], (0, Hp - H))
        bs = jnp.pad(layer["state"][1], (0, Hp - H))

        wx_all = jnp.concatenate([wxr, wxz, wxs], axis=1)     # (d_in_p, 3*Hp)
        b_all = jnp.concatenate([br, bz, bs])                 # (3*Hp,)
        wh_rz = jnp.concatenate([whr, whz], axis=1)           # (Hp, 2*Hp)

        # Hoisted input projection: one large GEMM for all T timesteps, with
        # the biases folded in; only h-dependent matmuls stay on the serial
        # critical path inside the kernel.
        gates = (jnp.dot(x.reshape(T * Bp, d_in_p).astype(compute_dtype),
                         wx_all.astype(compute_dtype),
                         preferred_element_type=jnp.float32)
                 + b_all[None, :]).reshape(T, Bp, 3 * Hp).astype(compute_dtype)

        # Intermediate layers write outputs in compute_dtype (halves the
        # inter-layer HBM traffic); last layer stays f32 for the returned seq.
        out_dtype = jnp.float32 if i == n_layers - 1 else compute_dtype

        outs = _gru_recurrence(gates, hidd_p[i],
                               wh_rz.astype(compute_dtype),
                               whs.astype(compute_dtype),
                               tc=tc, hp=Hp, nb=nb,
                               out_dtype=out_dtype)           # (T, Bp, Hp)

        hidds.append(outs[-1].astype(jnp.float32))  # final hidden state
        x = outs                      # next layer consumes this layer's outputs

    outs_final = x[:, :B, :H]
    hidds_final = jnp.stack(hidds, axis=0)[:, :B, :H]
    return outs_final, hidds_final


# --------------------------------------------------------------------------
# Pure-JAX reference (mirrors the PyTorch forward exactly) for verification.
# --------------------------------------------------------------------------
def monogru_reference(params, inps, hidd=None):
    T, B, _ = inps.shape
    n_layers = len(params)
    H = params[0]["state"][0].shape[0]
    if hidd is None:
        hidd = jnp.zeros((n_layers, B, H), jnp.float32)

    x = inps
    hidds = []
    for i, layer in enumerate(params):
        Wr, br = layer["reset"]
        Wz, bz = layer["update"]
        Ws, bs = layer["state"]
        h = hidd[i]
        outs_l = []
        for t in range(T):
            xt = x[t]
            xh = jnp.concatenate([xt, h], axis=-1)
            r = jax.nn.sigmoid(xh @ Wr.T + br)
            z = jax.nn.sigmoid(xh @ Wz.T + bz)
            s = jnp.tanh(jnp.concatenate([xt, r * h], axis=-1) @ Ws.T + bs)
            h = z * h + (1.0 - z) * s
            outs_l.append(h)
        x = jnp.stack(outs_l, axis=0)
        hidds.append(h)
    return x, jnp.stack(hidds, axis=0)


if __name__ == "__main__":
    n_input, n_hidden, n_layers = 4, 32, 2
    T, bs = 8, 2

    key = jax.random.PRNGKey(0)
    key, kp, kx = jax.random.split(key, 3)
    params = init_monogru_params(kp, n_input, n_hidden, n_layers)
    inps = jax.random.normal(kx, (T, bs, n_input), jnp.float32)

    ref_outs, ref_hidds = monogru_reference(params, inps)

    # f32 compute path with a small time chunk: tight correctness check that
    # exercises the multi-chunk hidden-state carry.
    fwd_f32 = jax.jit(functools.partial(monogru_forward,
                                        compute_dtype=jnp.float32,
                                        time_chunk=4))
    outs, hidds = fwd_f32(params, inps)
    outs = jax.block_until_ready(outs)
    hidds = jax.block_until_ready(hidds)
    assert outs.shape == (T, bs, n_hidden)
    assert hidds.shape == (n_layers, bs, n_hidden)
    np.testing.assert_allclose(np.asarray(outs), np.asarray(ref_outs),
                               rtol=2e-5, atol=2e-5)
    np.testing.assert_allclose(np.asarray(hidds), np.asarray(ref_hidds),
                               rtol=2e-5, atol=2e-5)

    # bf16 weights/activations/intermediate-layer outputs (MXU-native), f32
    # accumulation & hidden carry, default (large) time chunk: looser tolerance
    # against the f32 reference.
    fwd_bf16 = jax.jit(functools.partial(monogru_forward,
                                         compute_dtype=jnp.bfloat16))
    outs_b, hidds_b = fwd_bf16(params, inps)
    outs_b = jax.block_until_ready(outs_b)
    hidds_b = jax.block_until_ready(hidds_b)
    np.testing.assert_allclose(np.asarray(outs_b), np.asarray(ref_outs),
                               rtol=5e-2, atol=5e-2)
    np.testing.assert_allclose(np.asarray(hidds_b), np.asarray(ref_hidds),
                               rtol=5e-2, atol=5e-2)

    print("KERNEL_OK")
</pallas_src>

<mosaic_0001>
module attributes {stable_mosaic.version = 11 : i64} {
  func.func @_gru_recurrence_kernel(%arg0: i32, %arg1: i32, %arg2: memref<4x8x384xf32, #tpu.memory_space<vmem>>, %arg3: memref<8x128xf32, #tpu.memory_space<vmem>>, %arg4: memref<128x256xf32, #tpu.memory_space<any>>, %arg5: memref<128x128xf32, #tpu.memory_space<any>>, %arg6: memref<4x8x128xf32, #tpu.memory_space<vmem>>, %arg7: memref<8x128xf32, #tpu.memory_space<vmem>>, %arg8: memref<128x256xf32, #tpu.memory_space<vmem>>, %arg9: memref<128x128xf32, #tpu.memory_space<vmem>>, %arg10: memref<2x!tpu.dma_semaphore, #tpu.memory_space<semaphore_mem>>) attributes {dimension_semantics = [#tpu.dimension_semantics<parallel>, #tpu.dimension_semantics<arbitrary>], iteration_bounds = array<i64: 1, 2>, scalar_prefetch = 0 : i64, scratch_operands = 4 : i64, tpu.core_type = #tpu.core_type<tc>, window_params = [{transform_indices = @transform_0, window_bounds = array<i64: 4, 8, 384>}, {transform_indices = @transform_1, window_bounds = array<i64: 8, 128>}, {}, {}, {transform_indices = @transform_4, window_bounds = array<i64: 4, 8, 128>}]} {
    %c0_i32 = arith.constant 0 : i32
    %0 = arith.cmpi eq, %arg1, %c0_i32 : i32
    %1 = arith.extui %0 : i1 to i32
    %c0_i32_0 = arith.constant 0 : i32
    %2 = arith.cmpi ne, %1, %c0_i32_0 : i32
    scf.if %2 {
      %c0_i32_52 = arith.constant 0 : i32
      %141 = tpu.memref_slice %arg10[%c0_i32_52] : memref<2x!tpu.dma_semaphore, #tpu.memory_space<semaphore_mem>> -> memref<1x!tpu.dma_semaphore, #tpu.memory_space<semaphore_mem>>
      %142 = tpu.memref_squeeze %141 : memref<1x!tpu.dma_semaphore, #tpu.memory_space<semaphore_mem>> -> memref<!tpu.dma_semaphore, #tpu.memory_space<semaphore_mem>>
      tpu.enqueue_dma source(%arg4 : memref<128x256xf32, #tpu.memory_space<any>>) target(%arg8 : memref<128x256xf32, #tpu.memory_space<vmem>>) target_semaphore(%142 : memref<!tpu.dma_semaphore, #tpu.memory_space<semaphore_mem>>)
      %c1_i32_53 = arith.constant 1 : i32
      %143 = tpu.memref_slice %arg10[%c1_i32_53] : memref<2x!tpu.dma_semaphore, #tpu.memory_space<semaphore_mem>> -> memref<1x!tpu.dma_semaphore, #tpu.memory_space<semaphore_mem>>
      %144 = tpu.memref_squeeze %143 : memref<1x!tpu.dma_semaphore, #tpu.memory_space<semaphore_mem>> -> memref<!tpu.dma_semaphore, #tpu.memory_space<semaphore_mem>>
      tpu.enqueue_dma source(%arg5 : memref<128x128xf32, #tpu.memory_space<any>>) target(%arg9 : memref<128x128xf32, #tpu.memory_space<vmem>>) target_semaphore(%144 : memref<!tpu.dma_semaphore, #tpu.memory_space<semaphore_mem>>)
      %c0_54 = arith.constant 0 : index
      %c0_55 = arith.constant 0 : index
      %145 = vector.load %arg3[%c0_54, %c0_55] : memref<8x128xf32, #tpu.memory_space<vmem>>, vector<8x128xf32>
      %c0_56 = arith.constant 0 : index
      %c0_57 = arith.constant 0 : index
      %146 = vector.load %arg7[%c0_56, %c0_57] : memref<8x128xf32, #tpu.memory_space<vmem>>, vector<8x128xf32>
      tpu.vector_store %arg7[%c0_56, %c0_57], %145 {strides = array<i32>} : memref<8x128xf32, #tpu.memory_space<vmem>>, vector<8x128xf32>,
      %c0_i32_58 = arith.constant 0 : i32
      %147 = tpu.memref_slice %arg10[%c0_i32_58] : memref<2x!tpu.dma_semaphore, #tpu.memory_space<semaphore_mem>> -> memref<1x!tpu.dma_semaphore, #tpu.memory_space<semaphore_mem>>
      %148 = tpu.memref_squeeze %147 : memref<1x!tpu.dma_semaphore, #tpu.memory_space<semaphore_mem>> -> memref<!tpu.dma_semaphore, #tpu.memory_space<semaphore_mem>>
      tpu.wait_dma2 semaphore(%148 : memref<!tpu.dma_semaphore, #tpu.memory_space<semaphore_mem>>) src(%arg4 : memref<128x256xf32, #tpu.memory_space<any>>) dst(%arg8 : memref<128x256xf32, #tpu.memory_space<vmem>>)
      %c1_i32_59 = arith.constant 1 : i32
      %149 = tpu.memref_slice %arg10[%c1_i32_59] : memref<2x!tpu.dma_semaphore, #tpu.memory_space<semaphore_mem>> -> memref<1x!tpu.dma_semaphore, #tpu.memory_space<semaphore_mem>>
      %150 = tpu.memref_squeeze %149 : memref<1x!tpu.dma_semaphore, #tpu.memory_space<semaphore_mem>> -> memref<!tpu.dma_semaphore, #tpu.memory_space<semaphore_mem>>
      tpu.wait_dma2 semaphore(%150 : memref<!tpu.dma_semaphore, #tpu.memory_space<semaphore_mem>>) src(%arg5 : memref<128x128xf32, #tpu.memory_space<any>>) dst(%arg9 : memref<128x128xf32, #tpu.memory_space<vmem>>)
    } else {
    }
    %c0 = arith.constant 0 : index
    %c0_1 = arith.constant 0 : index
    %3 = vector.load %arg7[%c0, %c0_1] : memref<8x128xf32, #tpu.memory_space<vmem>>, vector<8x128xf32>
    %c0_i32_2 = arith.constant 0 : i32
    %4 = arith.index_cast %c0_i32_2 : i32 to index
    %c0_3 = arith.constant 0 : index
    %c0_4 = arith.constant 0 : index
    %5 = vector.load %arg2[%4, %c0_3, %c0_4] : memref<4x8x384xf32, #tpu.memory_space<vmem>>, vector<1x8x384xf32>
    %6 = vector.shape_cast %5 : vector<1x8x384xf32> to vector<8x384xf32>
    %c0_5 = arith.constant 0 : index
    %c0_6 = arith.constant 0 : index
    %7 = vector.load %arg8[%c0_5, %c0_6] : memref<128x256xf32, #tpu.memory_space<vmem>>, vector<128x256xf32>
    %cst = arith.constant dense<0.000000e+00> : vector<8x256xf32>
    %8 = tpu.matmul %3, %7, %cst {dimension_numbers = #tpu.dot_dimension_numbers<[1], [0], [0], [1], [0, 0, 1, 1], [], []>} : vector<8x128xf32>, vector<128x256xf32>, vector<8x256xf32> -> vector<8x256xf32>
    %9 = vector.extract_strided_slice %6 {offsets = [0, 0], sizes = [8, 128], strides = [1, 1]} : vector<8x384xf32> to vector<8x128xf32>
    %10 = vector.extract_strided_slice %8 {offsets = [0, 0], sizes = [8, 128], strides = [1, 1]} : vector<8x256xf32> to vector<8x128xf32>
    %11 = arith.addf %9, %10 : vector<8x128xf32>
    %12 = arith.negf %11 : vector<8x128xf32>
    %13 = math.exp %12 : vector<8x128xf32>
    %cst_7 = arith.constant 1.000000e+00 : f32
    %14 = vector.broadcast %cst_7 : f32 to vector<8x128xf32>
    %15 = arith.addf %14, %13 : vector<8x128xf32>
    %16 = arith.divf %14, %15 : vector<8x128xf32>
    %17 = vector.extract_strided_slice %6 {offsets = [0, 128], sizes = [8, 128], strides = [1, 1]} : vector<8x384xf32> to vector<8x128xf32>
    %18 = vector.extract_strided_slice %8 {offsets = [0, 128], sizes = [8, 128], strides = [1, 1]} : vector<8x256xf32> to vector<8x128xf32>
    %19 = arith.addf %17, %18 : vector<8x128xf32>
    %20 = arith.negf %19 : vector<8x128xf32>
    %21 = math.exp %20 : vector<8x128xf32>
    %cst_8 = arith.constant 1.000000e+00 : f32
    %22 = vector.broadcast %cst_8 : f32 to vector<8x128xf32>
    %23 = arith.addf %22, %21 : vector<8x128xf32>
    %24 = arith.divf %22, %23 : vector<8x128xf32>
    %25 = vector.extract_strided_slice %6 {offsets = [0, 256], sizes = [8, 128], strides = [1, 1]} : vector<8x384xf32> to vector<8x128xf32>
    %26 = arith.mulf %16, %3 : vector<8x128xf32>
    %c0_9 = arith.constant 0 : index
    %c0_10 = arith.constant 0 : index
    %27 = vector.load %arg9[%c0_9, %c0_10] : memref<128x128xf32, #tpu.memory_space<vmem>>, vector<128x128xf32>
    %cst_11 = arith.constant dense<0.000000e+00> : vector<8x128xf32>
    %28 = tpu.matmul %26, %27, %cst_11 {dimension_numbers = #tpu.dot_dimension_numbers<[1], [0], [0], [1], [0, 0, 1, 1], [], []>} : vector<8x128xf32>, vector<128x128xf32>, vector<8x128xf32> -> vector<8x128xf32>
    %29 = arith.addf %25, %28 : vector<8x128xf32>
    %30 = math.tanh %29 : vector<8x128xf32>
    %31 = arith.subf %3, %30 : vector<8x128xf32>
    %32 = arith.mulf %24, %31 : vector<8x128xf32>
    %33 = arith.addf %30, %32 : vector<8x128xf32>
    %34 = arith.index_cast %c0_i32_2 : i32 to index
    %c0_12 = arith.constant 0 : index
    %c0_13 = arith.constant 0 : index
    %35 = vector.load %arg6[%34, %c0_12, %c0_13] : memref<4x8x128xf32, #tpu.memory_space<vmem>>, vector<1x8x128xf32>
    %36 = vector.shape_cast %35 : vector<1x8x128xf32> to vector<8x128xf32>
    %37 = vector.shape_cast %33 : vector<8x128xf32> to vector<1x8x128xf32>
    tpu.vector_store %arg6[%34, %c0_12, %c0_13], %37 {strides = array<i32>} : memref<4x8x128xf32, #tpu.memory_space<vmem>>, vector<1x8x128xf32>,
    %c1_i32 = arith.constant 1 : i32
    %38 = arith.index_cast %c1_i32 : i32 to index
    %c0_14 = arith.constant 0 : index
    %c0_15 = arith.constant 0 : index
    %39 = vector.load %arg2[%38, %c0_14, %c0_15] : memref<4x8x384xf32, #tpu.memory_space<vmem>>, vector<1x8x384xf32>
    %40 = vector.shape_cast %39 : vector<1x8x384xf32> to vector<8x384xf32>
    %c0_16 = arith.constant 0 : index
    %c0_17 = arith.constant 0 : index
    %41 = vector.load %arg8[%c0_16, %c0_17] : memref<128x256xf32, #tpu.memory_space<vmem>>, vector<128x256xf32>
    %cst_18 = arith.constant dense<0.000000e+00> : vector<8x256xf32>
    %42 = tpu.matmul %33, %41, %cst_18 {dimension_numbers = #tpu.dot_dimension_numbers<[1], [0], [0], [1], [0, 0, 1, 1], [], []>} : vector<8x128xf32>, vector<128x256xf32>, vector<8x256xf32> -> vector<8x256xf32>
    %43 = vector.extract_strided_slice %40 {offsets = [0, 0], sizes = [8, 128], strides = [1, 1]} : vector<8x384xf32> to vector<8x128xf32>
    %44 = vector.extract_strided_slice %42 {offsets = [0, 0], sizes = [8, 128], strides = [1, 1]} : vector<8x256xf32> to vector<8x128xf32>
    %45 = arith.addf %43, %44 : vector<8x128xf32>
    %46 = arith.negf %45 : vector<8x128xf32>
    %47 = math.exp %46 : vector<8x128xf32>
    %cst_19 = arith.constant 1.000000e+00 : f32
    %48 = vector.broadcast %cst_19 : f32 to vector<8x128xf32>
    %49 = arith.addf %48, %47 : vector<8x128xf32>
    %50 = arith.divf %48, %49 : vector<8x128xf32>
    %51 = vector.extract_strided_slice %40 {offsets = [0, 128], sizes = [8, 128], strides = [1, 1]} : vector<8x384xf32> to vector<8x128xf32>
    %52 = vector.extract_strided_slice %42 {offsets = [0, 128], sizes = [8, 128], strides = [1, 1]} : vector<8x256xf32> to vector<8x128xf32>
    %53 = arith.addf %51, %52 : vector<8x128xf32>
    %54 = arith.negf %53 : vector<8x128xf32>
    %55 = math.exp %54 : vector<8x128xf32>
    %cst_20 = arith.constant 1.000000e+00 : f32
    %56 = vector.broadcast %cst_20 : f32 to vector<8x128xf32>
    %57 = arith.addf %56, %55 : vector<8x128xf32>
    %58 = arith.divf %56, %57 : vector<8x128xf32>
    %59 = vector.extract_strided_slice %40 {offsets = [0, 256], sizes = [8, 128], strides = [1, 1]} : vector<8x384xf32> to vector<8x128xf32>
    %60 = arith.mulf %50, %33 : vector<8x128xf32>
    %c0_21 = arith.constant 0 : index
    %c0_22 = arith.constant 0 : index
    %61 = vector.load %arg9[%c0_21, %c0_22] : memref<128x128xf32, #tpu.memory_space<vmem>>, vector<128x128xf32>
    %cst_23 = arith.constant dense<0.000000e+00> : vector<8x128xf32>
    %62 = tpu.matmul %60, %61, %cst_23 {dimension_numbers = #tpu.dot_dimension_numbers<[1], [0], [0], [1], [0, 0, 1, 1], [], []>} : vector<8x128xf32>, vector<128x128xf32>, vector<8x128xf32> -> vector<8x128xf32>
    %63 = arith.addf %59, %62 : vector<8x128xf32>
    %64 = math.tanh %63 : vector<8x128xf32>
    %65 = arith.subf %33, %64 : vector<8x128xf32>
    %66 = arith.mulf %58, %65 : vector<8x128xf32>
    %67 = arith.addf %64, %66 : vector<8x128xf32>
    %68 = arith.index_cast %c1_i32 : i32 to index
    %c0_24 = arith.constant 0 : index
    %c0_25 = arith.constant 0 : index
    %69 = vector.load %arg6[%68, %c0_24, %c0_25] : memref<4x8x128xf32, #tpu.memory_space<vmem>>, vector<1x8x128xf32>
    %70 = vector.shape_cast %69 : vector<1x8x128xf32> to vector<8x128xf32>
    %71 = vector.shape_cast %67 : vector<8x128xf32> to vector<1x8x128xf32>
    tpu.vector_store %arg6[%68, %c0_24, %c0_25], %71 {strides = array<i32>} : memref<4x8x128xf32, #tpu.memory_space<vmem>>, vector<1x8x128xf32>,
    %c2_i32 = arith.constant 2 : i32
    %72 = arith.index_cast %c2_i32 : i32 to index
    %c0_26 = arith.constant 0 : index
    %c0_27 = arith.constant 0 : index
    %73 = vector.load %arg2[%72, %c0_26, %c0_27] : memref<4x8x384xf32, #tpu.memory_space<vmem>>, vector<1x8x384xf32>
    %74 = vector.shape_cast %73 : vector<1x8x384xf32> to vector<8x384xf32>
    %c0_28 = arith.constant 0 : index
    %c0_29 = arith.constant 0 : index
    %75 = vector.load %arg8[%c0_28, %c0_29] : memref<128x256xf32, #tpu.memory_space<vmem>>, vector<128x256xf32>
    %cst_30 = arith.constant dense<0.000000e+00> : vector<8x256xf32>
    %76 = tpu.matmul %67, %75, %cst_30 {dimension_numbers = #tpu.dot_dimension_numbers<[1], [0], [0], [1], [0, 0, 1, 1], [], []>} : vector<8x128xf32>, vector<128x256xf32>, vector<8x256xf32> -> vector<8x256xf32>
    %77 = vector.extract_strided_slice %74 {offsets = [0, 0], sizes = [8, 128], strides = [1, 1]} : vector<8x384xf32> to vector<8x128xf32>
    %78 = vector.extract_strided_slice %76 {offsets = [0, 0], sizes = [8, 128], strides = [1, 1]} : vector<8x256xf32> to vector<8x128xf32>
    %79 = arith.addf %77, %78 : vector<8x128xf32>
    %80 = arith.negf %79 : vector<8x128xf32>
    %81 = math.exp %80 : vector<8x128xf32>
    %cst_31 = arith.constant 1.000000e+00 : f32
    %82 = vector.broadcast %cst_31 : f32 to vector<8x128xf32>
    %83 = arith.addf %82, %81 : vector<8x128xf32>
    %84 = arith.divf %82, %83 : vector<8x128xf32>
    %85 = vector.extract_strided_slice %74 {offsets = [0, 128], sizes = [8, 128], strides = [1, 1]} : vector<8x384xf32> to vector<8x128xf32>
    %86 = vector.extract_strided_slice %76 {offsets = [0, 128], sizes = [8, 128], strides = [1, 1]} : vector<8x256xf32> to vector<8x128xf32>
    %87 = arith.addf %85, %86 : vector<8x128xf32>
    %88 = arith.negf %87 : vector<8x128xf32>
    %89 = math.exp %88 : vector<8x128xf32>
    %cst_32 = arith.constant 1.000000e+00 : f32
    %90 = vector.broadcast %cst_32 : f32 to vector<8x128xf32>
    %91 = arith.addf %90, %89 : vector<8x128xf32>
    %92 = arith.divf %90, %91 : vector<8x128xf32>
    %93 = vector.extract_strided_slice %74 {offsets = [0, 256], sizes = [8, 128], strides = [1, 1]} : vector<8x384xf32> to vector<8x128xf32>
    %94 = arith.mulf %84, %67 : vector<8x128xf32>
    %c0_33 = arith.constant 0 : index
    %c0_34 = arith.constant 0 : index
    %95 = vector.load %arg9[%c0_33, %c0_34] : memref<128x128xf32, #tpu.memory_space<vmem>>, vector<128x128xf32>
    %cst_35 = arith.constant dense<0.000000e+00> : vector<8x128xf32>
    %96 = tpu.matmul %94, %95, %cst_35 {dimension_numbers = #tpu.dot_dimension_numbers<[1], [0], [0], [1], [0, 0, 1, 1], [], []>} : vector<8x128xf32>, vector<128x128xf32>, vector<8x128xf32> -> vector<8x128xf32>
    %97 = arith.addf %93, %96 : vector<8x128xf32>
    %98 = math.tanh %97 : vector<8x128xf32>
    %99 = arith.subf %67, %98 : vector<8x128xf32>
    %100 = arith.mulf %92, %99 : vector<8x128xf32>
    %101 = arith.addf %98, %100 : vector<8x128xf32>
    %102 = arith.index_cast %c2_i32 : i32 to index
    %c0_36 = arith.constant 0 : index
    %c0_37 = arith.constant 0 : index
    %103 = vector.load %arg6[%102, %c0_36, %c0_37] : memref<4x8x128xf32, #tpu.memory_space<vmem>>, vector<1x8x128xf32>
    %104 = vector.shape_cast %103 : vector<1x8x128xf32> to vector<8x128xf32>
    %105 = vector.shape_cast %101 : vector<8x128xf32> to vector<1x8x128xf32>
    tpu.vector_store %arg6[%102, %c0_36, %c0_37], %105 {strides = array<i32>} : memref<4x8x128xf32, #tpu.memory_space<vmem>>, vector<1x8x128xf32>,
    %c3_i32 = arith.constant 3 : i32
    %106 = arith.index_cast %c3_i32 : i32 to index
    %c0_38 = arith.constant 0 : index
    %c0_39 = arith.constant 0 : index
    %107 = vector.load %arg2[%106, %c0_38, %c0_39] : memref<4x8x384xf32, #tpu.memory_space<vmem>>, vector<1x8x384xf32>
    %108 = vector.shape_cast %107 : vector<1x8x384xf32> to vector<8x384xf32>
    %c0_40 = arith.constant 0 : index
    %c0_41 = arith.constant 0 : index
    %109 = vector.load %arg8[%c0_40, %c0_41] : memref<128x256xf32, #tpu.memory_space<vmem>>, vector<128x256xf32>
    %cst_42 = arith.constant dense<0.000000e+00> : vector<8x256xf32>
    %110 = tpu.matmul %101, %109, %cst_42 {dimension_numbers = #tpu.dot_dimension_numbers<[1], [0], [0], [1], [0, 0, 1, 1], [], []>} : vector<8x128xf32>, vector<128x256xf32>, vector<8x256xf32> -> vector<8x256xf32>
    %111 = vector.extract_strided_slice %108 {offsets = [0, 0], sizes = [8, 128], strides = [1, 1]} : vector<8x384xf32> to vector<8x128xf32>
    %112 = vector.extract_strided_slice %110 {offsets = [0, 0], sizes = [8, 128], strides = [1, 1]} : vector<8x256xf32> to vector<8x128xf32>
    %113 = arith.addf %111, %112 : vector<8x128xf32>
    %114 = arith.negf %113 : vector<8x128xf32>
    %115 = math.exp %114 : vector<8x128xf32>
    %cst_43 = arith.constant 1.000000e+00 : f32
    %116 = vector.broadcast %cst_43 : f32 to vector<8x128xf32>
    %117 = arith.addf %116, %115 : vector<8x128xf32>
    %118 = arith.divf %116, %117 : vector<8x128xf32>
    %119 = vector.extract_strided_slice %108 {offsets = [0, 128], sizes = [8, 128], strides = [1, 1]} : vector<8x384xf32> to vector<8x128xf32>
    %120 = vector.extract_strided_slice %110 {offsets = [0, 128], sizes = [8, 128], strides = [1, 1]} : vector<8x256xf32> to vector<8x128xf32>
    %121 = arith.addf %119, %120 : vector<8x128xf32>
    %122 = arith.negf %121 : vector<8x128xf32>
    %123 = math.exp %122 : vector<8x128xf32>
    %cst_44 = arith.constant 1.000000e+00 : f32
    %124 = vector.broadcast %cst_44 : f32 to vector<8x128xf32>
    %125 = arith.addf %124, %123 : vector<8x128xf32>
    %126 = arith.divf %124, %125 : vector<8x128xf32>
    %127 = vector.extract_strided_slice %108 {offsets = [0, 256], sizes = [8, 128], strides = [1, 1]} : vector<8x384xf32> to vector<8x128xf32>
    %128 = arith.mulf %118, %101 : vector<8x128xf32>
    %c0_45 = arith.constant 0 : index
    %c0_46 = arith.constant 0 : index
    %129 = vector.load %arg9[%c0_45, %c0_46] : memref<128x128xf32, #tpu.memory_space<vmem>>, vector<128x128xf32>
    %cst_47 = arith.constant dense<0.000000e+00> : vector<8x128xf32>
    %130 = tpu.matmul %128, %129, %cst_47 {dimension_numbers = #tpu.dot_dimension_numbers<[1], [0], [0], [1], [0, 0, 1, 1], [], []>} : vector<8x128xf32>, vector<128x128xf32>, vector<8x128xf32> -> vector<8x128xf32>
    %131 = arith.addf %127, %130 : vector<8x128xf32>
    %132 = math.tanh %131 : vector<8x128xf32>
    %133 = arith.subf %101, %132 : vector<8x128xf32>
    %134 = arith.mulf %126, %133 : vector<8x128xf32>
    %135 = arith.addf %132, %134 : vector<8x128xf32>
    %136 = arith.index_cast %c3_i32 : i32 to index
    %c0_48 = arith.constant 0 : index
    %c0_49 = arith.constant 0 : index
    %137 = vector.load %arg6[%136, %c0_48, %c0_49] : memref<4x8x128xf32, #tpu.memory_space<vmem>>, vector<1x8x128xf32>
    %138 = vector.shape_cast %137 : vector<1x8x128xf32> to vector<8x128xf32>
    %139 = vector.shape_cast %135 : vector<8x128xf32> to vector<1x8x128xf32>
    tpu.vector_store %arg6[%136, %c0_48, %c0_49], %139 {strides = array<i32>} : memref<4x8x128xf32, #tpu.memory_space<vmem>>, vector<1x8x128xf32>,
    %c4_i32 = arith.constant 4 : i32
    %c0_50 = arith.constant 0 : index
    %c0_51 = arith.constant 0 : index
    %140 = vector.load %arg7[%c0_50, %c0_51] : memref<8x128xf32, #tpu.memory_space<vmem>>, vector<8x128xf32>
    tpu.vector_store %arg7[%c0_50, %c0_51], %135 {strides = array<i32>} : memref<8x128xf32, #tpu.memory_space<vmem>>, vector<8x128xf32>,
    return
  }
  func.func @transform_0(%arg0: i32, %arg1: i32) -> (i32, i32, i32) {
    %c0_i32 = arith.constant 0 : i32
    %c0_i32_0 = arith.constant 0 : i32
    return %arg1, %arg0, %c0_i32 : i32, i32, i32
  }
  func.func @transform_1(%arg0: i32, %arg1: i32) -> (i32, i32) {
    %c0_i32 = arith.constant 0 : i32
    %c0_i32_0 = arith.constant 0 : i32
    return %arg0, %c0_i32 : i32, i32
  }
  func.func @transform_4(%arg0: i32, %arg1: i32) -> (i32, i32, i32) {
    %c0_i32 = arith.constant 0 : i32
    %c0_i32_0 = arith.constant 0 : i32
    return %arg1, %arg0, %c0_i32 : i32, i32, i32
  }
}

</mosaic_0001>

<llo_original>
// kernel: monogru_forward.2
$region0: #{monogru_forward.2}
  #allocation0 [shape = 'u32[]', space=smem, size = 0x4, offset = 0x4, fixed_abs, tag = 'smem constant byte address 0x4 - core index']
  #allocation1 [shape = 'u32[72,128]{1,0:T(1,128)}', space=vmem, size = 0x9000, scoped, tag = 'internal scratch']
  #allocation2 [shape = 'f32[8,128]{1,0:T(8,128)}', space=vmem, size = 0x1000, scoped, tag = 'scratch operand']
  #allocation3 [shape = 'f32[128,256]{1,0:T(8,128)}', space=vmem, size = 0x20000, scoped, tag = 'scratch operand']
  #allocation4 [shape = 'f32[128,128]{1,0:T(8,128)}', space=vmem, size = 0x10000, scoped, tag = 'scratch operand']
  #allocation5 [shape = 's32[2]{0}', space=sflag, size = 0x8, scoped, tag = 'scratch operand']
  #allocation6 [shape = 's32[]', space=sflag, size = 0x4, offset = 0, fixed_abs, tag = 'sflag constant byte address 0x0 - dummy sync flag']
  #allocation7 [shape = 's32[]', space=sflag, size = 0x4, offset = 0, fixed_abs, tag = 'sflag constant byte address 0x0 - dummy sync flag']
  %s0 = inlined_call_operand.vmem [shape: f32[8,8,384], index: 0, kind: input, shape index: {}]
  %s1 = inlined_call_operand.vmem [shape: f32[8,128], index: 1, kind: input, shape index: {}]
  %s2 = inlined_call_operand.vmem [shape: f32[128,256], index: 2, kind: input, shape index: {}]
  %s3 = inlined_call_operand.vmem [shape: f32[128,128], index: 3, kind: input, shape index: {}]
  %s4 = inlined_call_operand.vmem [shape: f32[8,8,128], index: 4, kind: output, shape index: {}]
  %s5 = sld [smem:[#allocation0]]
  $region83: #{monogru_forward.2} parent=0
    _
  %s7 = ssub.s32 1, %s5
  %s8 = scalar_select 0, %s7, %s5
  loop: start=0, step=1, limit=4
  $region2: #{monogru_forward.2} parent=0 // loop_pre_header
    _
  $region3: #{monogru_forward.2} parent=0 // loop_header
    %s10 = sphi 0, %s14
    %p11 = scmp.ge.s32.totalorder %s10, 4
    %s17 = sphi 0, %s29
    %s18 = sphi 0, %s25
    %s19 = sphi 0, %s17
    %s20 = sphi 0, %s18
    %s21 = sphi 0, %s19
    %s22 = sphi 0, %s20
    %s34 = sphi 0, %s36
    %s37 = sphi 0, %s34
    %s38 = sphi 0, %s37
    %s54 = sphi 0, %s38
    %s60 = sphi 0, %s62
    %s63 = sphi 0, %s60
    %s64 = sphi 0, %s63
    %s80 = sphi 0, %s64
    %s88 = sphi 0, %s90
    %s91 = sphi 0, %s88
    %s92 = sphi 0, %s91
    %s108 = sphi 0, %s92
  $region4: #{monogru_forward.2} parent=0 // loop_header_branch
    %13 = sbr.rel (%p11) target = $region8
  $region5: #{monogru_forward.2} parent=0 // loop_body
    %s15 = ssub.s32 %s10, 1
    %s16 = ssub.s32 %s10, 2
    %s23 = sadd.s32 1, %s18
    %p24 = scmp.ge.s32.totalorder %s23, 2
    %s25 = scalar_select %p24, 0, %s23
    %s26 = sadd.s32 1, %s17
    %s27 = scalar_select %p24, %s26, %s17
    %p28 = scmp.ge.s32.totalorder %s27, 1
    %s29 = scalar_select %p28, 0, %s27
    %s30 = ssub.s32 %s18, %s25
    %s31 = ssub.s32 %s17, %s29
    %s32 = sor.u32 %s30, %s31
    %p33 = scmp.eq.s32.totalorder %s32, 0
    %s35 = sadd.s32 %s34, 1
    %s36 = scalar_select %p33, %s34, %s35
    %p39 = pneg %p33
    %p40 = scmp.eq.s32.totalorder %s10, 1
    %p41 = por %p39, %p40
    %p42 = scmp.ne.s32.totalorder %s34, %s37
    %p43 = scmp.eq.s32.totalorder %s10, 0
    %p44 = por %p42, %p43
    %p45 = scmp.ne.s32.totalorder %s34, %s37
    %p46 = scmp.eq.s32.totalorder %s15, 1
    %p47 = por %p45, %p46
    %p48 = scmp.ne.s32.totalorder %s37, %s38
    %p49 = scmp.eq.s32.totalorder %s15, 0
    %p50 = por %p48, %p49
    %p51 = scmp.ne.s32.totalorder %s37, %s38
    %p52 = scmp.eq.s32.totalorder %s16, 1
    %p53 = por %p51, %p52
    %p55 = scmp.ne.s32.totalorder %s38, %s54
    %p56 = scmp.eq.s32.totalorder %s16, 0
    %p57 = por %p55, %p56
    %s58 = ssub.s32 %s17, %s29
    %p59 = scmp.eq.s32.totalorder %s58, 0
    %s61 = sadd.s32 %s60, 1
    %s62 = scalar_select %p59, %s60, %s61
    %p65 = pneg %p59
    %p66 = scmp.eq.s32.totalorder %s10, 1
    %p67 = por %p65, %p66
    %p68 = scmp.ne.s32.totalorder %s60, %s63
    %p69 = scmp.eq.s32.totalorder %s10, 0
    %p70 = por %p68, %p69
    %p71 = scmp.ne.s32.totalorder %s60, %s63
    %p72 = scmp.eq.s32.totalorder %s15, 1
    %p73 = por %p71, %p72
    %p74 = scmp.ne.s32.totalorder %s63, %s64
    %p75 = scmp.eq.s32.totalorder %s15, 0
    %p76 = por %p74, %p75
    %p77 = scmp.ne.s32.totalorder %s63, %s64
    %p78 = scmp.eq.s32.totalorder %s16, 1
    %p79 = por %p77, %p78
    %p81 = scmp.ne.s32.totalorder %s64, %s80
    %p82 = scmp.eq.s32.totalorder %s16, 0
    %p83 = por %p81, %p82
    %s84 = ssub.s32 %s18, %s25
    %s85 = ssub.s32 %s17, %s29
    %s86 = sor.u32 %s84, %s85
    %p87 = scmp.eq.s32.totalorder %s86, 0
    %s89 = sadd.s32 %s88, 1
    %s90 = scalar_select %p87, %s88, %s89
    %p93 = pneg %p87
    %p94 = scmp.eq.s32.totalorder %s10, 1
    %p95 = por %p93, %p94
    %p96 = scmp.ne.s32.totalorder %s88, %s91
    %p97 = scmp.eq.s32.totalorder %s10, 0
    %p98 = por %p96, %p97
    %p99 = scmp.ne.s32.totalorder %s88, %s91
    %p100 = scmp.eq.s32.totalorder %s15, 1
    %p101 = por %p99, %p100
    %p102 = scmp.ne.s32.totalorder %s91, %s92
    %p103 = scmp.eq.s32.totalorder %s15, 0
    %p104 = por %p102, %p103
    %p105 = scmp.ne.s32.totalorder %s91, %s92
    %p106 = scmp.eq.s32.totalorder %s16, 1
    %p107 = por %p105, %p106
    %p109 = scmp.ne.s32.totalorder %s92, %s108
    %p110 = scmp.eq.s32.totalorder %s16, 0
    %p111 = por %p109, %p110
    %p112 = scmp.le.s32.totalorder 1, %s10
    %p113 = scmp.lt.s32.totalorder %s10, 3
    %p114 = pnand %p112, %p113
    %p115 = pneg %p114
    // Predicated region
    $region9: #{monogru_forward.2} parent=5 // pred_check
      _
    $region10: #{monogru_forward.2} parent=5 // pred_check_branch
      %117 = sbr.rel (%p114) target = $region12
    $region11: #{monogru_forward.2} parent=5 // pred_region
      %s118 = ssub.s32 %s10, 1
      // Predicated region
      $region13: #{monogru_forward.2} parent=11 // pred_check
        %p119 = pneg %p76
      $region14: #{monogru_forward.2} parent=11 // pred_check_branch
        %121 = sbr.rel (%p119) target = $region16
      $region15: #{monogru_forward.2} parent=11 // pred_region
        %p122 = scmp.lt.s32.totalorder %s19, 0
        %s123 = scalar_select %p122, %s19, 0
        %s124 = smul.addr %s123, 8
        %s125 = scalar_lea.vmem %s1, %s124
      $region16: #{monogru_forward.2} parent=11 // pred_fallthru
        _
    $region12: #{monogru_forward.2} parent=5 // pred_fallthru
      _
    %p126 = scmp.lt.s32.totalorder %s10, 2
    // Predicated region
    $region17: #{monogru_forward.2} parent=5 // pred_check
      %p127 = pneg %p126
    $region18: #{monogru_forward.2} parent=5 // pred_check_branch
      %129 = sbr.rel (%p127) target = $region20
    $region19: #{monogru_forward.2} parent=5 // pred_region
      // Predicated region
      $region21: #{monogru_forward.2} parent=19 // pred_check
        %p130 = pneg %p44
      $region22: #{monogru_forward.2} parent=19 // pred_check_branch
        %132 = sbr.rel (%p130) target = $region24
      $region23: #{monogru_forward.2} parent=19 // pred_region
        %s133 = smul.u32 4, %s18
        %p134 = scmp.lt.s32.totalorder %s133, 7
        %s135 = scalar_select %p134, %s133, 7
        %p136 = scmp.lt.s32.totalorder %s17, 0
        %s137 = scalar_select %p136, %s17, 0
        %s138 = smul.addr %s137, 3
        %s139 = smul.addr %s135, 3
        %s140 = sadd.s32 %s138, %s139
        %s141 = smul.addr %s140, 8
        %s142 = scalar_lea.vmem %s0, %s141
        %s143 = smul.u32 4, %s18
      $region24: #{monogru_forward.2} parent=19 // pred_fallthru
        _
    $region20: #{monogru_forward.2} parent=5 // pred_fallthru
      _
    %p144 = scmp.le.s32.totalorder 1, %s10
    %p145 = scmp.lt.s32.totalorder %s10, 3
    %p146 = pnand %p144, %p145
    %p147 = pneg %p146
    // Predicated region
    $region25: #{monogru_forward.2} parent=5 // pred_check
      _
    $region26: #{monogru_forward.2} parent=5 // pred_check_branch
      %149 = sbr.rel (%p146) target = $region28
    $region27: #{monogru_forward.2} parent=5 // pred_region
      %s150 = ssub.s32 %s10, 1
      %s151 = smul.u32 4, %s20
      %p152 = scmp.lt.s32.totalorder %s151, 7
      %s153 = scalar_select %p152, %s151, 7
      %p154 = scmp.lt.s32.totalorder %s19, 0
      %s155 = scalar_select %p154, %s19, 0
      %s156 = smul.addr %s155, 3
      %s157 = smul.addr %s153, 3
      %s158 = sadd.s32 %s156, %s157
      %s159 = smul.addr %s158, 8
      %s160 = scalar_lea.vmem %s0, %s159
      %p161 = pneg %p50
      %p162 = pneg %p47
      %p163 = scmp.lt.s32.totalorder %s19, 0
      %s164 = scalar_select %p163, %s19, 0
      %s165 = smul.addr %s164, 8
      %s166 = scalar_lea.vmem %s1, %s165
      %p167 = pneg %p76
      %p168 = pneg %p73
      %p169 = pneg %p104
      %p170 = pneg %p101
      %s171 = smul.u32 4, %s20
      %p172 = scmp.lt.s32.totalorder %s171, 7
      %s173 = scalar_select %p172, %s171, 7
      %p174 = scmp.lt.s32.totalorder %s19, 0
      %s175 = scalar_select %p174, %s19, 0
      %s176 = sadd.s32 %s175, %s173
      %s177 = smul.addr %s176, 8
      %s178 = scalar_lea.vmem %s4, %s177
      %s179 = smul.u32 4, %s20
      %p180 = scmp.lt.s32.totalorder %s179, 7
      %s181 = scalar_select %p180, %s179, 7
      %p182 = scmp.lt.s32.totalorder %s19, 0
      %s183 = scalar_select %p182, %s19, 0
      %s184 = smul.addr %s183, 3
      %s185 = smul.addr %s181, 3
      %s186 = sadd.s32 %s184, %s185
      %s187 = smul.addr %s186, 8
      %s188 = scalar_lea.vmem %s0, %s187
      %s189 = smul.u32 4, %s20
      %p190 = scmp.lt.s32.totalorder %s19, 0
      %s191 = scalar_select %p190, %s19, 0
      %s192 = smul.addr %s191, 8
      %s193 = scalar_lea.vmem %s1, %s192
      %s194 = smul.u32 4, %s20
      %p195 = scmp.lt.s32.totalorder %s194, 7
      %s196 = scalar_select %p195, %s194, 7
      %p197 = scmp.lt.s32.totalorder %s19, 0
      %s198 = scalar_select %p197, %s19, 0
      %s199 = sadd.s32 %s198, %s196
      %s200 = smul.addr %s199, 8
      %s201 = scalar_lea.vmem %s4, %s200
      %s202 = smul.u32 4, %s20
      %p203 = scmp.eq.s32.totalorder %s20, 0
      // Predicated region
      $region29: #{monogru_forward.2} parent=27 // pred_check
        %p204 = pneg %p203
      $region30: #{monogru_forward.2} parent=27 // pred_check_branch
        %206 = sbr.rel (%p204) target = $region32
      $region31: #{monogru_forward.2} parent=27 // pred_region
        // Predicated region
        $region33: #{monogru_forward.2} parent=31 // pred_check
          _
        $region34: #{monogru_forward.2} parent=31 // pred_check_branch
          %208 = sbr.rel (0) target = $region36
        $region35: #{monogru_forward.2} parent=31 // pred_region
          loop: start=0, step=1, limit=1
          $region37: #{monogru_forward.2} parent=35 // loop_pre_header
            _
          $region38: #{monogru_forward.2} parent=35 // loop_header
            %s210 = sphi 0, %s214
            %p211 = scmp.ge.s32.totalorder %s210, 1
            %s215 = sphi %s2, %s2
            %s216 = sphi [#allocation3], [#allocation3]
          $region39: #{monogru_forward.2} parent=35 // loop_header_branch
            %213 = sbr.rel (%p211) target = $region43
          $region40: #{monogru_forward.2} parent=35 // loop_body
            %v217 = vld [vmem:[%s215] sm:$0xff]
            %218 = vst [vmem:[%s216] sm:$0xff] %v217
            %v219 = vld [vmem:[%s215 + $0x8] sm:$0xff]
            %220 = vst [vmem:[%s216 + $0x8] sm:$0xff] %v219
            %v221 = vld [vmem:[%s215 + $0x10] sm:$0xff]
            %222 = vst [vmem:[%s216 + $0x10] sm:$0xff] %v221
            %v223 = vld [vmem:[%s215 + $0x18] sm:$0xff]
            %224 = vst [vmem:[%s216 + $0x18] sm:$0xff] %v223
            %v225 = vld [vmem:[%s215 + $0x20] sm:$0xff]
            %226 = vst [vmem:[%s216 + $0x20] sm:$0xff] %v225
            %v227 = vld [vmem:[%s215 + $0x28] sm:$0xff]
            %228 = vst [vmem:[%s216 + $0x28] sm:$0xff] %v227
            %v229 = vld [vmem:[%s215 + $0x30] sm:$0xff]
            %230 = vst [vmem:[%s216 + $0x30] sm:$0xff] %v229
            %v231 = vld [vmem:[%s215 + $0x38] sm:$0xff]
            %232 = vst [vmem:[%s216 + $0x38] sm:$0xff] %v231
            %v233 = vld [vmem:[%s215 + $0x40] sm:$0xff]
            %234 = vst [vmem:[%s216 + $0x40] sm:$0xff] %v233
            %v235 = vld [vmem:[%s215 + $0x48] sm:$0xff]
            %236 = vst [vmem:[%s216 + $0x48] sm:$0xff] %v235
            %v237 = vld [vmem:[%s215 + $0x50] sm:$0xff]
            %238 = vst [vmem:[%s216 + $0x50] sm:$0xff] %v237
            %v239 = vld [vmem:[%s215 + $0x58] sm:$0xff]
            %240 = vst [vmem:[%s216 + $0x58] sm:$0xff] %v239
            %v241 = vld [vmem:[%s215 + $0x60] sm:$0xff]
            %242 = vst [vmem:[%s216 + $0x60] sm:$0xff] %v241
            %v243 = vld [vmem:[%s215 + $0x68] sm:$0xff]
            %244 = vst [vmem:[%s216 + $0x68] sm:$0xff] %v243
            %v245 = vld [vmem:[%s215 + $0x70] sm:$0xff]
            %246 = vst [vmem:[%s216 + $0x70] sm:$0xff] %v245
            %v247 = vld [vmem:[%s215 + $0x78] sm:$0xff]
            %248 = vst [vmem:[%s216 + $0x78] sm:$0xff] %v247
            %v249 = vld [vmem:[%s215 + $0x80] sm:$0xff]
            %250 = vst [vmem:[%s216 + $0x80] sm:$0xff] %v249
            %v251 = vld [vmem:[%s215 + $0x88] sm:$0xff]
            %252 = vst [vmem:[%s216 + $0x88] sm:$0xff] %v251
            %v253 = vld [vmem:[%s215 + $0x90] sm:$0xff]
            %254 = vst [vmem:[%s216 + $0x90] sm:$0xff] %v253
            %v255 = vld [vmem:[%s215 + $0x98] sm:$0xff]
            %256 = vst [vmem:[%s216 + $0x98] sm:$0xff] %v255
            %v257 = vld [vmem:[%s215 + $0xa0] sm:$0xff]
            %258 = vst [vmem:[%s216 + $0xa0] sm:$0xff] %v257
            %v259 = vld [vmem:[%s215 + $0xa8] sm:$0xff]
            %260 = vst [vmem:[%s216 + $0xa8] sm:$0xff] %v259
            %v261 = vld [vmem:[%s215 + $0xb0] sm:$0xff]
            %262 = vst [vmem:[%s216 + $0xb0] sm:$0xff] %v261
            %v263 = vld [vmem:[%s215 + $0xb8] sm:$0xff]
            %264 = vst [vmem:[%s216 + $0xb8] sm:$0xff] %v263
            %v265 = vld [vmem:[%s215 + $0xc0] sm:$0xff]
            %266 = vst [vmem:[%s216 + $0xc0] sm:$0xff] %v265
            %v267 = vld [vmem:[%s215 + $0xc8] sm:$0xff]
            %268 = vst [vmem:[%s216 + $0xc8] sm:$0xff] %v267
            %v269 = vld [vmem:[%s215 + $0xd0] sm:$0xff]
            %270 = vst [vmem:[%s216 + $0xd0] sm:$0xff] %v269
            %v271 = vld [vmem:[%s215 + $0xd8] sm:$0xff]
            %272 = vst [vmem:[%s216 + $0xd8] sm:$0xff] %v271
            %v273 = vld [vmem:[%s215 + $0xe0] sm:$0xff]
            %274 = vst [vmem:[%s216 + $0xe0] sm:$0xff] %v273
            %v275 = vld [vmem:[%s215 + $0xe8] sm:$0xff]
            %276 = vst [vmem:[%s216 + $0xe8] sm:$0xff] %v275
            %v277 = vld [vmem:[%s215 + $0xf0] sm:$0xff]
            %278 = vst [vmem:[%s216 + $0xf0] sm:$0xff] %v277
            %v279 = vld [vmem:[%s215 + $0xf8] sm:$0xff]
            %280 = vst [vmem:[%s216 + $0xf8] sm:$0xff] %v279
          $region41: #{monogru_forward.2} parent=35 // loop_footer
            %s214 = sadd.s32 1, %s210
          $region42: #{monogru_forward.2} parent=35 // loop_footer_branch
            %209 = sbr.rel target = $region38
          $region43: #{monogru_forward.2} parent=35 // loop_exit
            _
        $region36: #{monogru_forward.2} parent=31 // pred_fallthru
          _
        // Predicated region
        $region44: #{monogru_forward.2} parent=31 // pred_check
          _
        $region45: #{monogru_forward.2} parent=31 // pred_check_branch
          %282 = sbr.rel target = $region47
        $region46: #{monogru_forward.2} parent=31 // pred_region
          _
        $region47: #{monogru_forward.2} parent=31 // pred_fallthru
          _
        // Predicated region
        $region48: #{monogru_forward.2} parent=31 // pred_check
          _
        $region49: #{monogru_forward.2} parent=31 // pred_check_branch
          %285 = sbr.rel (0) target = $region51
        $region50: #{monogru_forward.2} parent=31 // pred_region
          %286 = vsyncadd [#allocation5], 4096
        $region51: #{monogru_forward.2} parent=31 // pred_fallthru
          _
        %s287 = scalar_lea.sflag [#allocation5], 1
        // Predicated region
        $region52: #{monogru_forward.2} parent=31 // pred_check
          _
        $region53: #{monogru_forward.2} parent=31 // pred_check_branch
          %289 = sbr.rel (0) target = $region55
        $region54: #{monogru_forward.2} parent=31 // pred_region
          loop: start=0, step=1, limit=1
          $region56: #{monogru_forward.2} parent=54 // loop_pre_header
            _
          $region57: #{monogru_forward.2} parent=54 // loop_header
            %s291 = sphi 0, %s295
            %p292 = scmp.ge.s32.totalorder %s291, 1
            %s296 = sphi %s3, %s3
            %s297 = sphi [#allocation4], [#allocation4]
          $region58: #{monogru_forward.2} parent=54 // loop_header_branch
            %294 = sbr.rel (%p292) target = $region62
          $region59: #{monogru_forward.2} parent=54 // loop_body
            %v298 = vld [vmem:[%s296] sm:$0xff]
            %299 = vst [vmem:[%s297] sm:$0xff] %v298
            %v300 = vld [vmem:[%s296 + $0x8] sm:$0xff]
            %301 = vst [vmem:[%s297 + $0x8] sm:$0xff] %v300
            %v302 = vld [vmem:[%s296 + $0x10] sm:$0xff]
            %303 = vst [vmem:[%s297 + $0x10] sm:$0xff] %v302
            %v304 = vld [vmem:[%s296 + $0x18] sm:$0xff]
            %305 = vst [vmem:[%s297 + $0x18] sm:$0xff] %v304
            %v306 = vld [vmem:[%s296 + $0x20] sm:$0xff]
            %307 = vst [vmem:[%s297 + $0x20] sm:$0xff] %v306
            %v308 = vld [vmem:[%s296 + $0x28] sm:$0xff]
            %309 = vst [vmem:[%s297 + $0x28] sm:$0xff] %v308
            %v310 = vld [vmem:[%s296 + $0x30] sm:$0xff]
            %311 = vst [vmem:[%s297 + $0x30] sm:$0xff] %v310
            %v312 = vld [vmem:[%s296 + $0x38] sm:$0xff]
            %313 = vst [vmem:[%s297 + $0x38] sm:$0xff] %v312
            %v314 = vld [vmem:[%s296 + $0x40] sm:$0xff]
            %315 = vst [vmem:[%s297 + $0x40] sm:$0xff] %v314
            %v316 = vld [vmem:[%s296 + $0x48] sm:$0xff]
            %317 = vst [vmem:[%s297 + $0x48] sm:$0xff] %v316
            %v318 = vld [vmem:[%s296 + $0x50] sm:$0xff]
            %319 = vst [vmem:[%s297 + $0x50] sm:$0xff] %v318
            %v320 = vld [vmem:[%s296 + $0x58] sm:$0xff]
            %321 = vst [vmem:[%s297 + $0x58] sm:$0xff] %v320
            %v322 = vld [vmem:[%s296 + $0x60] sm:$0xff]
            %323 = vst [vmem:[%s297 + $0x60] sm:$0xff] %v322
            %v324 = vld [vmem:[%s296 + $0x68] sm:$0xff]
            %325 = vst [vmem:[%s297 + $0x68] sm:$0xff] %v324
            %v326 = vld [vmem:[%s296 + $0x70] sm:$0xff]
            %327 = vst [vmem:[%s297 + $0x70] sm:$0xff] %v326
            %v328 = vld [vmem:[%s296 + $0x78] sm:$0xff]
            %329 = vst [vmem:[%s297 + $0x78] sm:$0xff] %v328
          $region60: #{monogru_forward.2} parent=54 // loop_footer
            %s295 = sadd.s32 1, %s291
          $region61: #{monogru_forward.2} parent=54 // loop_footer_branch
            %290 = sbr.rel target = $region57
          $region62: #{monogru_forward.2} parent=54 // loop_exit
            _
        $region55: #{monogru_forward.2} parent=31 // pred_fallthru
          _
        // Predicated region
        $region63: #{monogru_forward.2} parent=31 // pred_check
          _
        $region64: #{monogru_forward.2} parent=31 // pred_check_branch
          %331 = sbr.rel target = $region66
        $region65: #{monogru_forward.2} parent=31 // pred_region
          _
        $region66: #{monogru_forward.2} parent=31 // pred_fallthru
          _
        // Predicated region
        $region67: #{monogru_forward.2} parent=31 // pred_check
          _
        $region68: #{monogru_forward.2} parent=31 // pred_check_branch
          %334 = sbr.rel (0) target = $region70
        $region69: #{monogru_forward.2} parent=31 // pred_region
          %335 = vsyncadd %s287, 2048
        $region70: #{monogru_forward.2} parent=31 // pred_fallthru
          _
        %v336 = vld [vmem:[%s193] sm:$0xff]
        %337 = vst [vmem:[#allocation2] sm:$0xff] %v336
        %s338 = smul.u32 8, 16
        %s339 = smul.u32 %s338, 2
        %s340 = sshll.u32 %s339, 4
        %341 = dma.done [#allocation5], %s340
        %s342 = smul.u32 128, 1
        %s343 = sshll.u32 %s342, 4
        %344 = dma.done %s287, %s343
      $region32: #{monogru_forward.2} parent=27 // pred_fallthru
        _
      %v345 = vld [vmem:[#allocation2] sm:$0xff]
      %v346 = vld [vmem:[%s188] sm:$0xff]
      %v347 = vld [vmem:[%s188 + $0x8] sm:$0xff]
      %v348 = vld [vmem:[%s188 + $0x10] sm:$0xff]
      %v349 = vld [vmem:[#allocation3] sm:$0xff]
      %v350 = vld [vmem:[#allocation3 + $0x8] sm:$0xff]
      %v351 = vld [vmem:[#allocation3 + $0x10] sm:$0xff]
      %v352 = vld [vmem:[#allocation3 + $0x18] sm:$0xff]
      %v353 = vld [vmem:[#allocation3 + $0x20] sm:$0xff]
      %v354 = vld [vmem:[#allocation3 + $0x28] sm:$0xff]
      %v355 = vld [vmem:[#allocation3 + $0x30] sm:$0xff]
      %v356 = vld [vmem:[#allocation3 + $0x38] sm:$0xff]
      %v357 = vld [vmem:[#allocation3 + $0x40] sm:$0xff]
      %v358 = vld [vmem:[#allocation3 + $0x48] sm:$0xff]
      %v359 = vld [vmem:[#allocation3 + $0x50] sm:$0xff]
      %v360 = vld [vmem:[#allocation3 + $0x58] sm:$0xff]
      %v361 = vld [vmem:[#allocation3 + $0x60] sm:$0xff]
      %v362 = vld [vmem:[#allocation3 + $0x68] sm:$0xff]
      %v363 = vld [vmem:[#allocation3 + $0x70] sm:$0xff]
      %v364 = vld [vmem:[#allocation3 + $0x78] sm:$0xff]
      %v365 = vld [vmem:[#allocation3 + $0x80] sm:$0xff]
      %v366 = vld [vmem:[#allocation3 + $0x88] sm:$0xff]
      %v367 = vld [vmem:[#allocation3 + $0x90] sm:$0xff]
      %v368 = vld [vmem:[#allocation3 + $0x98] sm:$0xff]
      %v369 = vld [vmem:[#allocation3 + $0xa0] sm:$0xff]
      %v370 = vld [vmem:[#allocation3 + $0xa8] sm:$0xff]
      %v371 = vld [vmem:[#allocation3 + $0xb0] sm:$0xff]
      %v372 = vld [vmem:[#allocation3 + $0xb8] sm:$0xff]
      %v373 = vld [vmem:[#allocation3 + $0xc0] sm:$0xff]
      %v374 = vld [vmem:[#allocation3 + $0xc8] sm:$0xff]
      %v375 = vld [vmem:[#allocation3 + $0xd0] sm:$0xff]
      %v376 = vld [vmem:[#allocation3 + $0xd8] sm:$0xff]
      %v377 = vld [vmem:[#allocation3 + $0xe0] sm:$0xff]
      %v378 = vld [vmem:[#allocation3 + $0xe8] sm:$0xff]
      %v379 = vld [vmem:[#allocation3 + $0xf0] sm:$0xff]
      %v380 = vld [vmem:[#allocation3 + $0xf8] sm:$0xff]
      %381 = vmatpush.msra.mxu0 %v379
      %382 = vmatpush.msra.mxu0 %v377
      %383 = vmatpush.msra.mxu0 %v375
      %384 = vmatpush.msra.mxu0 %v373
      %385 = vmatpush.msra.mxu0 %v371
      %386 = vmatpush.msra.mxu0 %v369
      %387 = vmatpush.msra.mxu0 %v367
      %388 = vmatpush.msra.mxu0 %v365
      %389 = vmatpush.msra.mxu0 %v363
      %390 = vmatpush.msra.mxu0 %v361
      %391 = vmatpush.msra.mxu0 %v359
      %392 = vmatpush.msra.mxu0 %v357
      %393 = vmatpush.msra.mxu0 %v355
      %394 = vmatpush.msra.mxu0 %v353
      %395 = vmatpush.msra.mxu0 %v351
      %396 = vmatpush.msra.mxu0 %v349
      %397 = vmatmul.f32.gmra.mxu0 %v345
      %v398 = vpop.f32.mrf.mxu0
      %v399 = vadd.f32 0.0, %v398
      %400 = vdwg.mxu0
      %401 = vmatpush.msra.mxu0 %v380
      %402 = vmatpush.msra.mxu0 %v378
      %403 = vmatpush.msra.mxu0 %v376
      %404 = vmatpush.msra.mxu0 %v374
      %405 = vmatpush.msra.mxu0 %v372
      %406 = vmatpush.msra.mxu0 %v370
      %407 = vmatpush.msra.mxu0 %v368
      %408 = vmatpush.msra.mxu0 %v366
      %409 = vmatpush.msra.mxu0 %v364
      %410 = vmatpush.msra.mxu0 %v362
      %411 = vmatpush.msra.mxu0 %v360
      %412 = vmatpush.msra.mxu0 %v358
      %413 = vmatpush.msra.mxu0 %v356
      %414 = vmatpush.msra.mxu0 %v354
      %415 = vmatpush.msra.mxu0 %v352
      %416 = vmatpush.msra.mxu0 %v350
      %417 = vmatmul.f32.gmra.mxu0 %v345
      %v418 = vpop.f32.mrf.mxu0
      %v419 = vadd.f32 0.0, %v418
      %420 = vdwg.mxu0
      %v421 = vadd.f32 %v346, %v399
      %v422 = vxor.u32 %v421, 2147483648
      %v423 = vmul.f32 %v422, 1.442695
      %v424 = vpow.pop %v423
      %v425 = vadd.f32 %v424, 1.0
      %v426 = vrcp.pop %v425
      %v427 = vmul.f32 %v425, %v426
      %v428 = vsub.f32 1.0, %v427
      %v429 = vmul.f32 %v426, %v428
      %v430 = vadd.f32 %v426, %v429
      %vm431 = vweird.f32 %v425
      %vm432 = vweird.f32 %v426
      %vm433 = vmor %vm431, %vm432
      %v434 = vsel %vm433, %v426, %v430
      %v435 = vand.u32 2147483647, %v425
      %vm436 = vcmp.eq.f32.partialorder %v435, 8.507059e+37
      %v437 = vand.u32 %v425, 2147483648
      %v438 = vor.u32 1.1754944e-38, %v437
      %v439 = vsel %vm436, %v438, %v434
      %v440 = vmul.f32 1.0, %v439
      %v441 = vadd.f32 %v347, %v419
      %v442 = vxor.u32 %v441, 2147483648
      %v443 = vmul.f32 %v442, 1.442695
      %v444 = vpow.pop %v443
      %v445 = vadd.f32 %v444, 1.0
      %v446 = vrcp.pop %v445
      %v447 = vmul.f32 %v445, %v446
      %v448 = vsub.f32 1.0, %v447
      %v449 = vmul.f32 %v446, %v448
      %v450 = vadd.f32 %v446, %v449
      %vm451 = vweird.f32 %v445
      %vm452 = vweird.f32 %v446
      %vm453 = vmor %vm451, %vm452
      %v454 = vsel %vm453, %v446, %v450
      %v455 = vand.u32 2147483647, %v445
      %vm456 = vcmp.eq.f32.partialorder %v455, 8.507059e+37
      %v457 = vand.u32 %v445, 2147483648
      %v458 = vor.u32 1.1754944e-38, %v457
      %v459 = vsel %vm456, %v458, %v454
      %v460 = vmul.f32 1.0, %v459
      %v461 = vmul.f32 %v440, %v345
      %v462 = vld [vmem:[#allocation4] sm:$0xff]
      %v463 = vld [vmem:[#allocation4 + $0x8] sm:$0xff]
      %v464 = vld [vmem:[#allocation4 + $0x10] sm:$0xff]
      %v465 = vld [vmem:[#allocation4 + $0x18] sm:$0xff]
      %v466 = vld [vmem:[#allocation4 + $0x20] sm:$0xff]
      %v467 = vld [vmem:[#allocation4 + $0x28] sm:$0xff]
      %v468 = vld [vmem:[#allocation4 + $0x30] sm:$0xff]
      %v469 = vld [vmem:[#allocation4 + $0x38] sm:$0xff]
      %v470 = vld [vmem:[#allocation4 + $0x40] sm:$0xff]
      %v471 = vld [vmem:[#allocation4 + $0x48] sm:$0xff]
      %v472 = vld [vmem:[#allocation4 + $0x50] sm:$0xff]
      %v473 = vld [vmem:[#allocation4 + $0x58] sm:$0xff]
      %v474 = vld [vmem:[#allocation4 + $0x60] sm:$0xff]
      %v475 = vld [vmem:[#allocation4 + $0x68] sm:$0xff]
      %v476 = vld [vmem:[#allocation4 + $0x70] sm:$0xff]
      %v477 = vld [vmem:[#allocation4 + $0x78] sm:$0xff]
      %478 = vmatpush.msra.mxu0 %v477
      %479 = vmatpush.msra.mxu0 %v476
      %480 = vmatpush.msra.mxu0 %v475
      %481 = vmatpush.msra.mxu0 %v474
      %482 = vmatpush.msra.mxu0 %v473
      %483 = vmatpush.msra.mxu0 %v472
      %484 = vmatpush.msra.mxu0 %v471
      %485 = vmatpush.msra.mxu0 %v470
      %486 = vmatpush.msra.mxu0 %v469
      %487 = vmatpush.msra.mxu0 %v468
      %488 = vmatpush.msra.mxu0 %v467
      %489 = vmatpush.msra.mxu0 %v466
      %490 = vmatpush.msra.mxu0 %v465
      %491 = vmatpush.msra.mxu0 %v464
      %492 = vmatpush.msra.mxu0 %v463
      %493 = vmatpush.msra.mxu0 %v462
      %494 = vmatmul.f32.gmra.mxu0 %v461
      %v495 = vpop.f32.mrf.mxu0
      %v496 = vadd.f32 0.0, %v495
      %497 = vdwg.mxu0
      %v498 = vadd.f32 %v348, %v496
      %v499 = vtanh.pop %v498
      %v500 = vsub.f32 %v345, %v499
      %v501 = vmul.f32 %v460, %v500
      %v502 = vadd.f32 %v499, %v501
      %503 = vst [vmem:[%s201] sm:$0xff] %v502
      %s504 = scalar_lea.vmem %s188, 24
      %v505 = vld [vmem:[%s504] sm:$0xff]
      %v506 = vld [vmem:[%s504 + $0x8] sm:$0xff]
      %v507 = vld [vmem:[%s504 + $0x10] sm:$0xff]
      %v508 = vld [vmem:[#allocation3] sm:$0xff]
      %v509 = vld [vmem:[#allocation3 + $0x8] sm:$0xff]
      %v510 = vld [vmem:[#allocation3 + $0x10] sm:$0xff]
      %v511 = vld [vmem:[#allocation3 + $0x18] sm:$0xff]
      %v512 = vld [vmem:[#allocation3 + $0x20] sm:$0xff]
      %v513 = vld [vmem:[#allocation3 + $0x28] sm:$0xff]
      %v514 = vld [vmem:[#allocation3 + $0x30] sm:$0xff]
      %v515 = vld [vmem:[#allocation3 + $0x38] sm:$0xff]
      %v516 = vld [vmem:[#allocation3 + $0x40] sm:$0xff]
      %v517 = vld [vmem:[#allocation3 + $0x48] sm:$0xff]
      %v518 = vld [vmem:[#allocation3 + $0x50] sm:$0xff]
      %v519 = vld [vmem:[#allocation3 + $0x58] sm:$0xff]
      %v520 = vld [vmem:[#allocation3 + $0x60] sm:$0xff]
      %v521 = vld [vmem:[#allocation3 + $0x68] sm:$0xff]
      %v522 = vld [vmem:[#allocation3 + $0x70] sm:$0xff]
      %v523 = vld [vmem:[#allocation3 + $0x78] sm:$0xff]
      %v524 = vld [vmem:[#allocation3 + $0x80] sm:$0xff]
      %v525 = vld [vmem:[#allocation3 + $0x88] sm:$0xff]
      %v526 = vld [vmem:[#allocation3 + $0x90] sm:$0xff]
      %v527 = vld [vmem:[#allocation3 + $0x98] sm:$0xff]
      %v528 = vld [vmem:[#allocation3 + $0xa0] sm:$0xff]
      %v529 = vld [vmem:[#allocation3 + $0xa8] sm:$0xff]
      %v530 = vld [vmem:[#allocation3 + $0xb0] sm:$0xff]
      %v531 = vld [vmem:[#allocation3 + $0xb8] sm:$0xff]
      %v532 = vld [vmem:[#allocation3 + $0xc0] sm:$0xff]
      %v533 = vld [vmem:[#allocation3 + $0xc8] sm:$0xff]
      %v534 = vld [vmem:[#allocation3 + $0xd0] sm:$0xff]
      %v535 = vld [vmem:[#allocation3 + $0xd8] sm:$0xff]
      %v536 = vld [vmem:[#allocation3 + $0xe0] sm:$0xff]
      %v537 = vld [vmem:[#allocation3 + $0xe8] sm:$0xff]
      %v538 = vld [vmem:[#allocation3 + $0xf0] sm:$0xff]
      %v539 = vld [vmem:[#allocation3 + $0xf8] sm:$0xff]
      %540 = vmatpush.msra.mxu0 %v538
      %541 = vmatpush.msra.mxu0 %v536
      %542 = vmatpush.msra.mxu0 %v534
      %543 = vmatpush.msra.mxu0 %v532
      %544 = vmatpush.msra.mxu0 %v530
      %545 = vmatpush.msra.mxu0 %v528
      %546 = vmatpush.msra.mxu0 %v526
      %547 = vmatpush.msra.mxu0 %v524
      %548 = vmatpush.msra.mxu0 %v522
      %549 = vmatpush.msra.mxu0 %v520
      %550 = vmatpush.msra.mxu0 %v518
      %551 = vmatpush.msra.mxu0 %v516
      %552 = vmatpush.msra.mxu0 %v514
      %553 = vmatpush.msra.mxu0 %v512
      %554 = vmatpush.msra.mxu0 %v510
      %555 = vmatpush.msra.mxu0 %v508
      %556 = vmatmul.f32.gmra.mxu0 %v502
      %v557 = vpop.f32.mrf.mxu0
      %v558 = vadd.f32 0.0, %v557
      %559 = vdwg.mxu0
      %560 = vmatpush.msra.mxu0 %v539
      %561 = vmatpush.msra.mxu0 %v537
      %562 = vmatpush.msra.mxu0 %v535
      %563 = vmatpush.msra.mxu0 %v533
      %564 = vmatpush.msra.mxu0 %v531
      %565 = vmatpush.msra.mxu0 %v529
      %566 = vmatpush.msra.mxu0 %v527
      %567 = vmatpush.msra.mxu0 %v525
      %568 = vmatpush.msra.mxu0 %v523
      %569 = vmatpush.msra.mxu0 %v521
      %570 = vmatpush.msra.mxu0 %v519
      %571 = vmatpush.msra.mxu0 %v517
      %572 = vmatpush.msra.mxu0 %v515
      %573 = vmatpush.msra.mxu0 %v513
      %574 = vmatpush.msra.mxu0 %v511
      %575 = vmatpush.msra.mxu0 %v509
      %576 = vmatmul.f32.gmra.mxu0 %v502
      %v577 = vpop.f32.mrf.mxu0
      %v578 = vadd.f32 0.0, %v577
      %579 = vdwg.mxu0
      %v580 = vadd.f32 %v505, %v558
      %v581 = vxor.u32 %v580, 2147483648
      %v582 = vmul.f32 %v581, 1.442695
      %v583 = vpow.pop %v582
      %v584 = vadd.f32 %v583, 1.0
      %v585 = vrcp.pop %v584
      %v586 = vmul.f32 %v584, %v585
      %v587 = vsub.f32 1.0, %v586
      %v588 = vmul.f32 %v585, %v587
      %v589 = vadd.f32 %v585, %v588
      %vm590 = vweird.f32 %v584
      %vm591 = vweird.f32 %v585
      %vm592 = vmor %vm590, %vm591
      %v593 = vsel %vm592, %v585, %v589
      %v594 = vand.u32 2147483647, %v584
      %vm595 = vcmp.eq.f32.partialorder %v594, 8.507059e+37
      %v596 = vand.u32 %v584, 2147483648
      %v597 = vor.u32 1.1754944e-38, %v596
      %v598 = vsel %vm595, %v597, %v593
      %v599 = vmul.f32 1.0, %v598
      %v600 = vadd.f32 %v506, %v578
      %v601 = vxor.u32 %v600, 2147483648
      %v602 = vmul.f32 %v601, 1.442695
      %v603 = vpow.pop %v602
      %v604 = vadd.f32 %v603, 1.0
      %v605 = vrcp.pop %v604
      %v606 = vmul.f32 %v604, %v605
      %v607 = vsub.f32 1.0, %v606
      %v608 = vmul.f32 %v605, %v607
      %v609 = vadd.f32 %v605, %v608
      %vm610 = vweird.f32 %v604
      %vm611 = vweird.f32 %v605
      %vm612 = vmor %vm610, %vm611
      %v613 = vsel %vm612, %v605, %v609
      %v614 = vand.u32 2147483647, %v604
      %vm615 = vcmp.eq.f32.partialorder %v614, 8.507059e+37
      %v616 = vand.u32 %v604, 2147483648
      %v617 = vor.u32 1.1754944e-38, %v616
      %v618 = vsel %vm615, %v617, %v613
      %v619 = vmul.f32 1.0, %v618
      %v620 = vmul.f32 %v599, %v502
      %v621 = vld [vmem:[#allocation4] sm:$0xff]
      %v622 = vld [vmem:[#allocation4 + $0x8] sm:$0xff]
      %v623 = vld [vmem:[#allocation4 + $0x10] sm:$0xff]
      %v624 = vld [vmem:[#allocation4 + $0x18] sm:$0xff]
      %v625 = vld [vmem:[#allocation4 + $0x20] sm:$0xff]
      %v626 = vld [vmem:[#allocation4 + $0x28] sm:$0xff]
      %v627 = vld [vmem:[#allocation4 + $0x30] sm:$0xff]
      %v628 = vld [vmem:[#allocation4 + $0x38] sm:$0xff]
      %v629 = vld [vmem:[#allocation4 + $0x40] sm:$0xff]
      %v630 = vld [vmem:[#allocation4 + $0x48] sm:$0xff]
      %v631 = vld [vmem:[#allocation4 + $0x50] sm:$0xff]
      %v632 = vld [vmem:[#allocation4 + $0x58] sm:$0xff]
      %v633 = vld [vmem:[#allocation4 + $0x60] sm:$0xff]
      %v634 = vld [vmem:[#allocation4 + $0x68] sm:$0xff]
      %v635 = vld [vmem:[#allocation4 + $0x70] sm:$0xff]
      %v636 = vld [vmem:[#allocation4 + $0x78] sm:$0xff]
      %637 = vmatpush.msra.mxu0 %v636
      %638 = vmatpush.msra.mxu0 %v635
      %639 = vmatpush.msra.mxu0 %v634
      %640 = vmatpush.msra.mxu0 %v633
      %641 = vmatpush.msra.mxu0 %v632
      %642 = vmatpush.msra.mxu0 %v631
      %643 = vmatpush.msra.mxu0 %v630
      %644 = vmatpush.msra.mxu0 %v629
      %645 = vmatpush.msra.mxu0 %v628
      %646 = vmatpush.msra.mxu0 %v627
      %647 = vmatpush.msra.mxu0 %v626
      %648 = vmatpush.msra.mxu0 %v625
      %649 = vmatpush.msra.mxu0 %v624
      %650 = vmatpush.msra.mxu0 %v623
      %651 = vmatpush.msra.mxu0 %v622
      %652 = vmatpush.msra.mxu0 %v621
      %653 = vmatmul.f32.gmra.mxu0 %v620
      %v654 = vpop.f32.mrf.mxu0
      %v655 = vadd.f32 0.0, %v654
      %656 = vdwg.mxu0
      %v657 = vadd.f32 %v507, %v655
      %v658 = vtanh.pop %v657
      %v659 = vsub.f32 %v502, %v658
      %v660 = vmul.f32 %v619, %v659
      %v661 = vadd.f32 %v658, %v660
      %s662 = scalar_lea.vmem %s201, 8
      %663 = vst [vmem:[%s662] sm:$0xff] %v661
      %s664 = scalar_lea.vmem %s188, 48
      %v665 = vld [vmem:[%s664] sm:$0xff]
      %v666 = vld [vmem:[%s664 + $0x8] sm:$0xff]
      %v667 = vld [vmem:[%s664 + $0x10] sm:$0xff]
      %v668 = vld [vmem:[#allocation3] sm:$0xff]
      %v669 = vld [vmem:[#allocation3 + $0x8] sm:$0xff]
      %v670 = vld [vmem:[#allocation3 + $0x10] sm:$0xff]
      %v671 = vld [vmem:[#allocation3 + $0x18] sm:$0xff]
      %v672 = vld [vmem:[#allocation3 + $0x20] sm:$0xff]
      %v673 = vld [vmem:[#allocation3 + $0x28] sm:$0xff]
      %v674 = vld [vmem:[#allocation3 + $0x30] sm:$0xff]
      %v675 = vld [vmem:[#allocation3 + $0x38] sm:$0xff]
      %v676 = vld [vmem:[#allocation3 + $0x40] sm:$0xff]
      %v677 = vld [vmem:[#allocation3 + $0x48] sm:$0xff]
      %v678 = vld [vmem:[#allocation3 + $0x50] sm:$0xff]
      %v679 = vld [vmem:[#allocation3 + $0x58] sm:$0xff]
      %v680 = vld [vmem:[#allocation3 + $0x60] sm:$0xff]
      %v681 = vld [vmem:[#allocation3 + $0x68] sm:$0xff]
      %v682 = vld [vmem:[#allocation3 + $0x70] sm:$0xff]
      %v683 = vld [vmem:[#allocation3 + $0x78] sm:$0xff]
      %v684 = vld [vmem:[#allocation3 + $0x80] sm:$0xff]
      %v685 = vld [vmem:[#allocation3 + $0x88] sm:$0xff]
      %v686 = vld [vmem:[#allocation3 + $0x90] sm:$0xff]
      %v687 = vld [vmem:[#allocation3 + $0x98] sm:$0xff]
      %v688 = vld [vmem:[#allocation3 + $0xa0] sm:$0xff]
      %v689 = vld [vmem:[#allocation3 + $0xa8] sm:$0xff]
      %v690 = vld [vmem:[#allocation3 + $0xb0] sm:$0xff]
      %v691 = vld [vmem:[#allocation3 + $0xb8] sm:$0xff]
      %v692 = vld [vmem:[#allocation3 + $0xc0] sm:$0xff]
      %v693 = vld [vmem:[#allocation3 + $0xc8] sm:$0xff]
      %v694 = vld [vmem:[#allocation3 + $0xd0] sm:$0xff]
      %v695 = vld [vmem:[#allocation3 + $0xd8] sm:$0xff]
      %v696 = vld [vmem:[#allocation3 + $0xe0] sm:$0xff]
      %v697 = vld [vmem:[#allocation3 + $0xe8] sm:$0xff]
      %v698 = vld [vmem:[#allocation3 + $0xf0] sm:$0xff]
      %v699 = vld [vmem:[#allocation3 + $0xf8] sm:$0xff]
      %700 = vmatpush.msra.mxu0 %v698
      %701 = vmatpush.msra.mxu0 %v696
      %702 = vmatpush.msra.mxu0 %v694
      %703 = vmatpush.msra.mxu0 %v692
      %704 = vmatpush.msra.mxu0 %v690
      %705 = vmatpush.msra.mxu0 %v688
      %706 = vmatpush.msra.mxu0 %v686
      %707 = vmatpush.msra.mxu0 %v684
      %708 = vmatpush.msra.mxu0 %v682
      %709 = vmatpush.msra.mxu0 %v680
      %710 = vmatpush.msra.mxu0 %v678
      %711 = vmatpush.msra.mxu0 %v676
      %712 = vmatpush.msra.mxu0 %v674
      %713 = vmatpush.msra.mxu0 %v672
      %714 = vmatpush.msra.mxu0 %v670
      %715 = vmatpush.msra.mxu0 %v668
      %716 = vmatmul.f32.gmra.mxu0 %v661
      %v717 = vpop.f32.mrf.mxu0
      %v718 = vadd.f32 0.0, %v717
      %719 = vdwg.mxu0
      %720 = vmatpush.msra.mxu0 %v699
      %721 = vmatpush.msra.mxu0 %v697
      %722 = vmatpush.msra.mxu0 %v695
      %723 = vmatpush.msra.mxu0 %v693
      %724 = vmatpush.msra.mxu0 %v691
      %725 = vmatpush.msra.mxu0 %v689
      %726 = vmatpush.msra.mxu0 %v687
      %727 = vmatpush.msra.mxu0 %v685
      %728 = vmatpush.msra.mxu0 %v683
      %729 = vmatpush.msra.mxu0 %v681
      %730 = vmatpush.msra.mxu0 %v679
      %731 = vmatpush.msra.mxu0 %v677
      %732 = vmatpush.msra.mxu0 %v675
      %733 = vmatpush.msra.mxu0 %v673
      %734 = vmatpush.msra.mxu0 %v671
      %735 = vmatpush.msra.mxu0 %v669
      %736 = vmatmul.f32.gmra.mxu0 %v661
      %v737 = vpop.f32.mrf.mxu0
      %v738 = vadd.f32 0.0, %v737
      %739 = vdwg.mxu0
      %v740 = vadd.f32 %v665, %v718
      %v741 = vxor.u32 %v740, 2147483648
      %v742 = vmul.f32 %v741, 1.442695
      %v743 = vpow.pop %v742
      %v744 = vadd.f32 %v743, 1.0
      %v745 = vrcp.pop %v744
      %v746 = vmul.f32 %v744, %v745
      %v747 = vsub.f32 1.0, %v746
      %v748 = vmul.f32 %v745, %v747
      %v749 = vadd.f32 %v745, %v748
      %vm750 = vweird.f32 %v744
      %vm751 = vweird.f32 %v745
      %vm752 = vmor %vm750, %vm751
      %v753 = vsel %vm752, %v745, %v749
      %v754 = vand.u32 2147483647, %v744
      %vm755 = vcmp.eq.f32.partialorder %v754, 8.507059e+37
      %v756 = vand.u32 %v744, 2147483648
      %v757 = vor.u32 1.1754944e-38, %v756
      %v758 = vsel %vm755, %v757, %v753
      %v759 = vmul.f32 1.0, %v758
      %v760 = vadd.f32 %v666, %v738
      %v761 = vxor.u32 %v760, 2147483648
      %v762 = vmul.f32 %v761, 1.442695
      %v763 = vpow.pop %v762
      %v764 = vadd.f32 %v763, 1.0
      %v765 = vrcp.pop %v764
      %v766 = vmul.f32 %v764, %v765
      %v767 = vsub.f32 1.0, %v766
      %v768 = vmul.f32 %v765, %v767
      %v769 = vadd.f32 %v765, %v768
      %vm770 = vweird.f32 %v764
      %vm771 = vweird.f32 %v765
      %vm772 = vmor %vm770, %vm771
      %v773 = vsel %vm772, %v765, %v769
      %v774 = vand.u32 2147483647, %v764
      %vm775 = vcmp.eq.f32.partialorder %v774, 8.507059e+37
      %v776 = vand.u32 %v764, 2147483648
      %v777 = vor.u32 1.1754944e-38, %v776
      %v778 = vsel %vm775, %v777, %v773
      %v779 = vmul.f32 1.0, %v778
      %v780 = vmul.f32 %v759, %v661
      %v781 = vld [vmem:[#allocation4] sm:$0xff]
      %v782 = vld [vmem:[#allocation4 + $0x8] sm:$0xff]
      %v783 = vld [vmem:[#allocation4 + $0x10] sm:$0xff]
      %v784 = vld [vmem:[#allocation4 + $0x18] sm:$0xff]
      %v785 = vld [vmem:[#allocation4 + $0x20] sm:$0xff]
      %v786 = vld [vmem:[#allocation4 + $0x28] sm:$0xff]
      %v787 = vld [vmem:[#allocation4 + $0x30] sm:$0xff]
      %v788 = vld [vmem:[#allocation4 + $0x38] sm:$0xff]
      %v789 = vld [vmem:[#allocation4 + $0x40] sm:$0xff]
      %v790 = vld [vmem:[#allocation4 + $0x48] sm:$0xff]
      %v791 = vld [vmem:[#allocation4 + $0x50] sm:$0xff]
      %v792 = vld [vmem:[#allocation4 + $0x58] sm:$0xff]
      %v793 = vld [vmem:[#allocation4 + $0x60] sm:$0xff]
      %v794 = vld [vmem:[#allocation4 + $0x68] sm:$0xff]
      %v795 = vld [vmem:[#allocation4 + $0x70] sm:$0xff]
      %v796 = vld [vmem:[#allocation4 + $0x78] sm:$0xff]
      %797 = vmatpush.msra.mxu0 %v796
      %798 = vmatpush.msra.mxu0 %v795
      %799 = vmatpush.msra.mxu0 %v794
      %800 = vmatpush.msra.mxu0 %v793
      %801 = vmatpush.msra.mxu0 %v792
      %802 = vmatpush.msra.mxu0 %v791
      %803 = vmatpush.msra.mxu0 %v790
      %804 = vmatpush.msra.mxu0 %v789
      %805 = vmatpush.msra.mxu0 %v788
      %806 = vmatpush.msra.mxu0 %v787
      %807 = vmatpush.msra.mxu0 %v786
      %808 = vmatpush.msra.mxu0 %v785
      %809 = vmatpush.msra.mxu0 %v784
      %810 = vmatpush.msra.mxu0 %v783
      %811 = vmatpush.msra.mxu0 %v782
      %812 = vmatpush.msra.mxu0 %v781
      %813 = vmatmul.f32.gmra.mxu0 %v780
      %v814 = vpop.f32.mrf.mxu0
      %v815 = vadd.f32 0.0, %v814
      %816 = vdwg.mxu0
      %v817 = vadd.f32 %v667, %v815
      %v818 = vtanh.pop %v817
      %v819 = vsub.f32 %v661, %v818
      %v820 = vmul.f32 %v779, %v819
      %v821 = vadd.f32 %v818, %v820
      %s822 = scalar_lea.vmem %s201, 16
      %823 = vst [vmem:[%s822] sm:$0xff] %v821
      %s824 = scalar_lea.vmem %s188, 72
      %v825 = vld [vmem:[%s824] sm:$0xff]
      %v826 = vld [vmem:[%s824 + $0x8] sm:$0xff]
      %v827 = vld [vmem:[%s824 + $0x10] sm:$0xff]
      %v828 = vld [vmem:[#allocation3] sm:$0xff]
      %v829 = vld [vmem:[#allocation3 + $0x8] sm:$0xff]
      %v830 = vld [vmem:[#allocation3 + $0x10] sm:$0xff]
      %v831 = vld [vmem:[#allocation3 + $0x18] sm:$0xff]
      %v832 = vld [vmem:[#allocation3 + $0x20] sm:$0xff]
      %v833 = vld [vmem:[#allocation3 + $0x28] sm:$0xff]
      %v834 = vld [vmem:[#allocation3 + $0x30] sm:$0xff]
      %v835 = vld [vmem:[#allocation3 + $0x38] sm:$0xff]
      %v836 = vld [vmem:[#allocation3 + $0x40] sm:$0xff]
      %v837 = vld [vmem:[#allocation3 + $0x48] sm:$0xff]
      %v838 = vld [vmem:[#allocation3 + $0x50] sm:$0xff]
      %v839 = vld [vmem:[#allocation3 + $0x58] sm:$0xff]
      %v840 = vld [vmem:[#allocation3 + $0x60] sm:$0xff]
      %v841 = vld [vmem:[#allocation3 + $0x68] sm:$0xff]
      %v842 = vld [vmem:[#allocation3 + $0x70] sm:$0xff]
      %v843 = vld [vmem:[#allocation3 + $0x78] sm:$0xff]
      %v844 = vld [vmem:[#allocation3 + $0x80] sm:$0xff]
      %v845 = vld [vmem:[#allocation3 + $0x88] sm:$0xff]
      %v846 = vld [vmem:[#allocation3 + $0x90] sm:$0xff]
      %v847 = vld [vmem:[#allocation3 + $0x98] sm:$0xff]
      %v848 = vld [vmem:[#allocation3 + $0xa0] sm:$0xff]
      %v849 = vld [vmem:[#allocation3 + $0xa8] sm:$0xff]
      %v850 = vld [vmem:[#allocation3 + $0xb0] sm:$0xff]
      %v851 = vld [vmem:[#allocation3 + $0xb8] sm:$0xff]
      %v852 = vld [vmem:[#allocation3 + $0xc0] sm:$0xff]
      %v853 = vld [vmem:[#allocation3 + $0xc8] sm:$0xff]
      %v854 = vld [vmem:[#allocation3 + $0xd0] sm:$0xff]
      %v855 = vld [vmem:[#allocation3 + $0xd8] sm:$0xff]
      %v856 = vld [vmem:[#allocation3 + $0xe0] sm:$0xff]
      %v857 = vld [vmem:[#allocation3 + $0xe8] sm:$0xff]
      %v858 = vld [vmem:[#allocation3 + $0xf0] sm:$0xff]
      %v859 = vld [vmem:[#allocation3 + $0xf8] sm:$0xff]
      %860 = vmatpush.msra.mxu0 %v858
      %861 = vmatpush.msra.mxu0 %v856
      %862 = vmatpush.msra.mxu0 %v854
      %863 = vmatpush.msra.mxu0 %v852
      %864 = vmatpush.msra.mxu0 %v850
      %865 = vmatpush.msra.mxu0 %v848
      %866 = vmatpush.msra.mxu0 %v846
      %867 = vmatpush.msra.mxu0 %v844
      %868 = vmatpush.msra.mxu0 %v842
      %869 = vmatpush.msra.mxu0 %v840
      %870 = vmatpush.msra.mxu0 %v838
      %871 = vmatpush.msra.mxu0 %v836
      %872 = vmatpush.msra.mxu0 %v834
      %873 = vmatpush.msra.mxu0 %v832
      %874 = vmatpush.msra.mxu0 %v830
      %875 = vmatpush.msra.mxu0 %v828
      %876 = vmatmul.f32.gmra.mxu0 %v821
      %v877 = vpop.f32.mrf.mxu0
      %v878 = vadd.f32 0.0, %v877
      %879 = vdwg.mxu0
      %880 = vmatpush.msra.mxu0 %v859
      %881 = vmatpush.msra.mxu0 %v857
      %882 = vmatpush.msra.mxu0 %v855
      %883 = vmatpush.msra.mxu0 %v853
      %884 = vmatpush.msra.mxu0 %v851
      %885 = vmatpush.msra.mxu0 %v849
      %886 = vmatpush.msra.mxu0 %v847
      %887 = vmatpush.msra.mxu0 %v845
      %888 = vmatpush.msra.mxu0 %v843
      %889 = vmatpush.msra.mxu0 %v841
      %890 = vmatpush.msra.mxu0 %v839
      %891 = vmatpush.msra.mxu0 %v837
      %892 = vmatpush.msra.mxu0 %v835
      %893 = vmatpush.msra.mxu0 %v833
      %894 = vmatpush.msra.mxu0 %v831
      %895 = vmatpush.msra.mxu0 %v829
      %896 = vmatmul.f32.gmra.mxu0 %v821
      %v897 = vpop.f32.mrf.mxu0
      %v898 = vadd.f32 0.0, %v897
      %899 = vdwg.mxu0
      %v900 = vadd.f32 %v825, %v878
      %v901 = vxor.u32 %v900, 2147483648
      %v902 = vmul.f32 %v901, 1.442695
      %v903 = vpow.pop %v902
      %v904 = vadd.f32 %v903, 1.0
      %v905 = vrcp.pop %v904
      %v906 = vmul.f32 %v904, %v905
      %v907 = vsub.f32 1.0, %v906
      %v908 = vmul.f32 %v905, %v907
      %v909 = vadd.f32 %v905, %v908
      %vm910 = vweird.f32 %v904
      %vm911 = vweird.f32 %v905
      %vm912 = vmor %vm910, %vm911
      %v913 = vsel %vm912, %v905, %v909
      %v914 = vand.u32 2147483647, %v904
      %vm915 = vcmp.eq.f32.partialorder %v914, 8.507059e+37
      %v916 = vand.u32 %v904, 2147483648
      %v917 = vor.u32 1.1754944e-38, %v916
      %v918 = vsel %vm915, %v917, %v913
      %v919 = vmul.f32 1.0, %v918
      %v920 = vadd.f32 %v826, %v898
      %v921 = vxor.u32 %v920, 2147483648
      %v922 = vmul.f32 %v921, 1.442695
      %v923 = vpow.pop %v922
      %v924 = vadd.f32 %v923, 1.0
      %v925 = vrcp.pop %v924
      %v926 = vmul.f32 %v924, %v925
      %v927 = vsub.f32 1.0, %v926
      %v928 = vmul.f32 %v925, %v927
      %v929 = vadd.f32 %v925, %v928
      %vm930 = vweird.f32 %v924
      %vm931 = vweird.f32 %v925
      %vm932 = vmor %vm930, %vm931
      %v933 = vsel %vm932, %v925, %v929
      %v934 = vand.u32 2147483647, %v924
      %vm935 = vcmp.eq.f32.partialorder %v934, 8.507059e+37
      %v936 = vand.u32 %v924, 2147483648
      %v937 = vor.u32 1.1754944e-38, %v936
      %v938 = vsel %vm935, %v937, %v933
      %v939 = vmul.f32 1.0, %v938
      %v940 = vmul.f32 %v919, %v821
      %v941 = vld [vmem:[#allocation4] sm:$0xff]
      %v942 = vld [vmem:[#allocation4 + $0x8] sm:$0xff]
      %v943 = vld [vmem:[#allocation4 + $0x10] sm:$0xff]
      %v944 = vld [vmem:[#allocation4 + $0x18] sm:$0xff]
      %v945 = vld [vmem:[#allocation4 + $0x20] sm:$0xff]
      %v946 = vld [vmem:[#allocation4 + $0x28] sm:$0xff]
      %v947 = vld [vmem:[#allocation4 + $0x30] sm:$0xff]
      %v948 = vld [vmem:[#allocation4 + $0x38] sm:$0xff]
      %v949 = vld [vmem:[#allocation4 + $0x40] sm:$0xff]
      %v950 = vld [vmem:[#allocation4 + $0x48] sm:$0xff]
      %v951 = vld [vmem:[#allocation4 + $0x50] sm:$0xff]
      %v952 = vld [vmem:[#allocation4 + $0x58] sm:$0xff]
      %v953 = vld [vmem:[#allocation4 + $0x60] sm:$0xff]
      %v954 = vld [vmem:[#allocation4 + $0x68] sm:$0xff]
      %v955 = vld [vmem:[#allocation4 + $0x70] sm:$0xff]
      %v956 = vld [vmem:[#allocation4 + $0x78] sm:$0xff]
      %957 = vmatpush.msra.mxu0 %v956
      %958 = vmatpush.msra.mxu0 %v955
      %959 = vmatpush.msra.mxu0 %v954
      %960 = vmatpush.msra.mxu0 %v953
      %961 = vmatpush.msra.mxu0 %v952
      %962 = vmatpush.msra.mxu0 %v951
      %963 = vmatpush.msra.mxu0 %v950
      %964 = vmatpush.msra.mxu0 %v949
      %965 = vmatpush.msra.mxu0 %v948
      %966 = vmatpush.msra.mxu0 %v947
      %967 = vmatpush.msra.mxu0 %v946
      %968 = vmatpush.msra.mxu0 %v945
      %969 = vmatpush.msra.mxu0 %v944
      %970 = vmatpush.msra.mxu0 %v943
      %971 = vmatpush.msra.mxu0 %v942
      %972 = vmatpush.msra.mxu0 %v941
      %973 = vmatmul.f32.gmra.mxu0 %v940
      %v974 = vpop.f32.mrf.mxu0
      %v975 = vadd.f32 0.0, %v974
      %976 = vdwg.mxu0
      %v977 = vadd.f32 %v827, %v975
      %v978 = vtanh.pop %v977
      %v979 = vsub.f32 %v821, %v978
      %v980 = vmul.f32 %v939, %v979
      %v981 = vadd.f32 %v978, %v980
      %s982 = scalar_lea.vmem %s201, 24
      %983 = vst [vmem:[%s982] sm:$0xff] %v981
      %984 = vst [vmem:[#allocation2] sm:$0xff] %v981
      %s985 = smul.u32 4, %s20
      %p986 = scmp.lt.s32.totalorder %s985, 7
      %s987 = scalar_select %p986, %s985, 7
      %p988 = scmp.lt.s32.totalorder %s19, 0
      %s989 = scalar_select %p988, %s19, 0
      %s990 = sadd.s32 %s989, %s987
      %s991 = smul.addr %s990, 8
      %s992 = scalar_lea.vmem %s4, %s991
      // Predicated region
      $region71: #{monogru_forward.2} parent=27 // pred_check
        %p993 = pneg %p101
      $region72: #{monogru_forward.2} parent=27 // pred_check_branch
        %995 = sbr.rel (%p993) target = $region74
      $region73: #{monogru_forward.2} parent=27 // pred_region
        %s996 = smul.u32 4, %s20
      $region74: #{monogru_forward.2} parent=27 // pred_fallthru
        _
    $region28: #{monogru_forward.2} parent=5 // pred_fallthru
      _
    %p997 = scmp.le.s32.totalorder 2, %s10
    // Predicated region
    $region75: #{monogru_forward.2} parent=5 // pred_check
      %p998 = pneg %p997
    $region76: #{monogru_forward.2} parent=5 // pred_check_branch
      %1000 = sbr.rel (%p998) target = $region78
    $region77: #{monogru_forward.2} parent=5 // pred_region
      %s1001 = ssub.s32 %s10, 2
      // Predicated region
      $region79: #{monogru_forward.2} parent=77 // pred_check
        %p1002 = pneg %p107
      $region80: #{monogru_forward.2} parent=77 // pred_check_branch
        %1004 = sbr.rel (%p1002) target = $region82
      $region81: #{monogru_forward.2} parent=77 // pred_region
        %s1005 = smul.u32 4, %s22
        %p1006 = scmp.lt.s32.totalorder %s1005, 7
        %s1007 = scalar_select %p1006, %s1005, 7
        %p1008 = scmp.lt.s32.totalorder %s21, 0
        %s1009 = scalar_select %p1008, %s21, 0
        %s1010 = sadd.s32 %s1009, %s1007
        %s1011 = smul.addr %s1010, 8
        %s1012 = scalar_lea.vmem %s4, %s1011
      $region82: #{monogru_forward.2} parent=77 // pred_fallthru
        _
    $region78: #{monogru_forward.2} parent=5 // pred_fallthru
      _
  $region6: #{monogru_forward.2} parent=0 // loop_footer
    %s14 = sadd.s32 1, %s10
  $region7: #{monogru_forward.2} parent=0 // loop_footer_branch
    %9 = sbr.rel target = $region3
  $region8: #{monogru_forward.2} parent=0 // loop_exit
    _
  %1013 = vsyncmov [#allocation5]
  %s1014 = vpop.sfrf %1013
  %p1015 = scmp.eq.s32.totalorder %s1014, 0
  %p1016 = pneg %p1015
  %1018 = shalt.err (%p1016)
  %s1019 = scalar_lea.sflag [#allocation5], 1
  %1020 = vsyncmov %s1019
  %s1021 = vpop.sfrf %1020
  %p1022 = scmp.eq.s32.totalorder %s1021, 0
  %p1023 = pneg %p1022
  %1025 = shalt.err (%p1023)

</llo_original>
